<compile_context>
chip_gen: v6e
topology: v6e:2x2x1
jax: 0.10.0
libtpu: 0.0.40
codegen_flags: <defaults>
</compile_context>

<pallas_src>
import jax
import jax.numpy as jnp
from jax.experimental import pallas as pl
from jax.experimental.pallas import tpu as pltpu

HIDDEN = 64


def _lstm_head_kernel(x_ref,      # (T_CHUNK*B, F)  time-major rows (row = t*B + b)
                      wih0_ref,   # (F, 4H)   layer-0 input weights, gate order [i,f,o,g]
                      whh0_ref,   # (H, 4H)   layer-0 recurrent weights
                      b0_ref,     # (1, 4H)   b_ih_l0 + b_hh_l0
                      w1_ref,     # (2H, 4H)  fused [W_ih_l1; W_hh_l1]
                      b1_ref,     # (1, 4H)   b_ih_l1 + b_hh_l1
                      wfc_ref,    # (H, P)    fc weight (transposed)
                      bfc_ref,    # (1, P)    fc bias
                      out_ref,    # (B, P)
                      h1_s, c1_s, h2_s, c2_s):   # persistent (B, H) VMEM state
    H = HIDDEN
    B, _ = h1_s.shape
    rows, _ = x_ref.shape
    t_chunk = rows // B
    t_blk = pl.program_id(0)

    @pl.when(t_blk == 0)
    def _init():
        h1_s[...] = jnp.zeros_like(h1_s)
        c1_s[...] = jnp.zeros_like(c1_s)
        h2_s[...] = jnp.zeros_like(h2_s)
        c2_s[...] = jnp.zeros_like(c2_s)

    # Hoisted once per grid step: weights and bias broadcasts (JAX does not CSE
    # broadcast_in_dim, so never leave "+ b" broadcasts inside the time loop).
    whh0 = whh0_ref[...]
    w1 = w1_ref[...]
    b1 = jnp.broadcast_to(b1_ref[...], (B, 4 * H))

    # Layer-0 input projection for the whole chunk as ONE matmul, bias folded in.
    xg = (jnp.dot(x_ref[...], wih0_ref[...], preferred_element_type=jnp.float32)
          + jnp.broadcast_to(b0_ref[...], (rows, 4 * H)))

    h1 = h1_s[...]
    c1 = c1_s[...]
    h2 = h2_s[...]
    c2 = c2_s[...]

    def gates(g):
        # gate order [i, f, o, g]: one wide sigmoid + one tanh instead of 4 slices.
        sig = jax.nn.sigmoid(g[:, :3 * H])
        return sig[:, 0:H], sig[:, H:2 * H], sig[:, 2 * H:3 * H], jnp.tanh(g[:, 3 * H:])

    for t in range(t_chunk):   # fully unrolled: layer-1(t) can overlap layer-0(t+1)
        # layer 0: input part precomputed above, only the recurrent dot per step
        g0 = xg[t * B:(t + 1) * B, :] + jnp.dot(
            h1, whh0, preferred_element_type=jnp.float32)
        i0, f0, o0, gg0 = gates(g0)
        c1 = f0 * c1 + i0 * gg0
        h1 = o0 * jnp.tanh(c1)

        # dropout(p=0.2) between LSTM layers is identity in eval mode
        # layer 1: fused single dot  [h1 | h2] @ [W_ih_l1 ; W_hh_l1]
        z = jnp.concatenate([h1, h2], axis=-1)                         # (B, 2H)
        g1 = jnp.dot(z, w1, preferred_element_type=jnp.float32) + b1
        i1, f1, o1, gg1 = gates(g1)
        c2 = f1 * c2 + i1 * gg1
        h2 = o1 * jnp.tanh(c2)

    h1_s[...] = h1
    c1_s[...] = c1
    h2_s[...] = h2
    c2_s[...] = c2

    @pl.when(t_blk == pl.num_programs(0) - 1)
    def _finalize():
        # out[:, -1, :] -> dropout (identity, eval) -> fc
        out_ref[...] = (jnp.dot(h2, wfc_ref[...], preferred_element_type=jnp.float32)
                        + bfc_ref[...])


def _pick_t_chunk(T, B):
    # Single chunk when the sequence is short; otherwise the largest chunk <= 32 that
    # divides T and keeps the x block sublane-aligned ((t_chunk*B) % 8 == 0).
    for cand in (32, 16, 8, 4):
        if cand < T and T % cand == 0 and (cand * B) % 8 == 0:
            return cand
    return T


def hotel_pred_forward(x_btf, params, *, t_chunk=None):
    """x_btf: (B, T, F) float32, batch_first like the PyTorch module."""
    B, T, F = x_btf.shape
    H = HIDDEN
    P = params["wfc"].shape[1]

    if t_chunk is None:
        t_chunk = _pick_t_chunk(T, B)
    assert T % t_chunk == 0
    num_chunks = T // t_chunk
    rows_blk = t_chunk * B
    assert num_chunks == 1 or rows_blk % 8 == 0

    # time-major flattened rows: row index = t*B + b (free reshape of contiguous HBM)
    x_rows = jnp.transpose(x_btf, (1, 0, 2)).reshape(T * B, F)

    grid_spec = pltpu.PrefetchScalarGridSpec(
        num_scalar_prefetch=0,
        grid=(num_chunks,),
        in_specs=[
            pl.BlockSpec((rows_blk, F), lambda t: (t, 0)),      # streamed x chunk
            pl.BlockSpec((F, 4 * H), lambda t: (0, 0)),         # resident weights
            pl.BlockSpec((H, 4 * H), lambda t: (0, 0)),
            pl.BlockSpec((1, 4 * H), lambda t: (0, 0)),
            pl.BlockSpec((2 * H, 4 * H), lambda t: (0, 0)),
            pl.BlockSpec((1, 4 * H), lambda t: (0, 0)),
            pl.BlockSpec((H, P), lambda t: (0, 0)),
            pl.BlockSpec((1, P), lambda t: (0, 0)),
        ],
        out_specs=pl.BlockSpec((B, P), lambda t: (0, 0)),       # resident, written at end
        scratch_shapes=[pltpu.VMEM((B, HIDDEN), jnp.float32) for _ in range(4)],
    )

    return pl.pallas_call(
        _lstm_head_kernel,
        out_shape=jax.ShapeDtypeStruct((B, P), jnp.float32),
        grid_spec=grid_spec,
        compiler_params=pltpu.CompilerParams(
            # recurrent time axis must run in order
            dimension_semantics=("arbitrary",),
            # explicit budget that fits v5e/v6e (128 MiB) and v7x (64 MiB) VMEM
            vmem_limit_bytes=32 * 1024 * 1024,
        ),
    )(x_rows, params["wih0"], params["whh0"], params["b0"],
      params["w1"], params["b1"], params["wfc"], params["bfc"])


def init_torch_params(key, features, n_predictions=1):
    """Deterministic PyTorch-layout LSTM/Linear weights (nn.LSTM-style uniform init)."""
    H = HIDDEN
    k = 1.0 / jnp.sqrt(H)
    keys = jax.random.split(key, 10)

    def u(kk, shape):
        return jax.random.uniform(kk, shape, jnp.float32, -k, k)

    return {
        "w_ih_l0": u(keys[0], (4 * H, features)),
        "w_hh_l0": u(keys[1], (4 * H, H)),
        "b_ih_l0": u(keys[2], (4 * H,)),
        "b_hh_l0": u(keys[3], (4 * H,)),
        "w_ih_l1": u(keys[4], (4 * H, H)),
        "w_hh_l1": u(keys[5], (4 * H, H)),
        "b_ih_l1": u(keys[6], (4 * H,)),
        "b_hh_l1": u(keys[7], (4 * H,)),
        "w_fc": u(keys[8], (n_predictions, H)),
        "b_fc": u(keys[9], (n_predictions,)),
    }


def prepare_kernel_params(tp):
    """Transpose, permute gates [i,f,g,o]->[i,f,o,g], sum biases, fuse layer-1 weights."""
    H = HIDDEN
    perm = jnp.concatenate([jnp.arange(0, 2 * H),        # i, f
                            jnp.arange(3 * H, 4 * H),    # o
                            jnp.arange(2 * H, 3 * H)])   # g

    def w(name):    # (4H, K) -> (K, 4H) with gate-permuted columns
        return tp[name][perm, :].T

    def b(ih, hh):  # summed, gate-permuted, (1, 4H)
        return (tp[ih] + tp[hh])[perm][None, :]

    return {
        "wih0": w("w_ih_l0"),
        "whh0": w("w_hh_l0"),
        "b0": b("b_ih_l0", "b_hh_l0"),
        "w1": jnp.concatenate([w("w_ih_l1"), w("w_hh_l1")], axis=0),   # (2H, 4H)
        "b1": b("b_ih_l1", "b_hh_l1"),
        "wfc": tp["w_fc"].T,
        "bfc": tp["b_fc"][None, :],
    }


def _reference_forward(x_btf, tp):
    """Pure-JAX replica of the PyTorch eval-mode forward (gate order [i,f,g,o])."""
    H = HIDDEN
    B, T, _ = x_btf.shape

    def cell(x_in, h, c, w_ih, w_hh, b_ih, b_hh):
        g = x_in @ w_ih.T + h @ w_hh.T + b_ih + b_hh
        i = jax.nn.sigmoid(g[:, 0 * H:1 * H])
        f = jax.nn.sigmoid(g[:, 1 * H:2 * H])
        gg = jnp.tanh(g[:, 2 * H:3 * H])
        o = jax.nn.sigmoid(g[:, 3 * H:4 * H])
        c = f * c + i * gg
        return o * jnp.tanh(c), c

    h1 = c1 = h2 = c2 = jnp.zeros((B, H), jnp.float32)
    for t in range(T):
        h1, c1 = cell(x_btf[:, t, :], h1, c1,
                      tp["w_ih_l0"], tp["w_hh_l0"], tp["b_ih_l0"], tp["b_hh_l0"])
        h2, c2 = cell(h1, h2, c2,
                      tp["w_ih_l1"], tp["w_hh_l1"], tp["b_ih_l1"], tp["b_hh_l1"])
    return h2 @ tp["w_fc"].T + tp["b_fc"]


if __name__ == "__main__":
    B, T, F, P = 2, 8, 4, 1
    key = jax.random.PRNGKey(0)
    kx, kp = jax.random.split(key)
    x = jax.random.normal(kx, (B, T, F), jnp.float32)    # PyTorch batch_first (B, T, F)
    torch_params = init_torch_params(kp, features=F, n_predictions=P)
    kernel_params = prepare_kernel_params(torch_params)

    out = jax.block_until_ready(hotel_pred_forward(x, kernel_params))
    ref = _reference_forward(x, torch_params)

    assert out.shape == (B, P)
    assert jnp.allclose(out, ref, rtol=1e-4, atol=1e-4), (out, ref)
    print("KERNEL_OK")
</pallas_src>

<mosaic_0001>
module attributes {stable_mosaic.version = 11 : i64} {
  func.func @_lstm_head_kernel(%arg0: i32, %arg1: memref<8x4xf32, #tpu.memory_space<vmem>>, %arg2: memref<4x256xf32, #tpu.memory_space<vmem>>, %arg3: memref<64x256xf32, #tpu.memory_space<vmem>>, %arg4: memref<1x256xf32, #tpu.memory_space<vmem>>, %arg5: memref<128x256xf32, #tpu.memory_space<vmem>>, %arg6: memref<1x256xf32, #tpu.memory_space<vmem>>, %arg7: memref<64x1xf32, #tpu.memory_space<vmem>>, %arg8: memref<1x1xf32, #tpu.memory_space<vmem>>, %arg9: memref<2x1xf32, #tpu.memory_space<vmem>>, %arg10: memref<2x64xf32, #tpu.memory_space<vmem>>, %arg11: memref<2x64xf32, #tpu.memory_space<vmem>>, %arg12: memref<2x64xf32, #tpu.memory_space<vmem>>, %arg13: memref<2x64xf32, #tpu.memory_space<vmem>>) attributes {dimension_semantics = [#tpu.dimension_semantics<arbitrary>], iteration_bounds = array<i64: 2>, scalar_prefetch = 0 : i64, scratch_operands = 4 : i64, tpu.core_type = #tpu.core_type<tc>, window_params = [{transform_indices = @transform_0, window_bounds = array<i64: 8, 4>}, {pipeline_mode = #tpu.pipeline_mode<synchronous>, transform_indices = @transform_1, window_bounds = array<i64: 4, 256>}, {pipeline_mode = #tpu.pipeline_mode<synchronous>, transform_indices = @transform_2, window_bounds = array<i64: 64, 256>}, {pipeline_mode = #tpu.pipeline_mode<synchronous>, transform_indices = @transform_3, window_bounds = array<i64: 1, 256>}, {pipeline_mode = #tpu.pipeline_mode<synchronous>, transform_indices = @transform_4, window_bounds = array<i64: 128, 256>}, {pipeline_mode = #tpu.pipeline_mode<synchronous>, transform_indices = @transform_5, window_bounds = array<i64: 1, 256>}, {pipeline_mode = #tpu.pipeline_mode<synchronous>, transform_indices = @transform_6, window_bounds = array<i64: 64, 1>}, {pipeline_mode = #tpu.pipeline_mode<synchronous>, transform_indices = @transform_7, window_bounds = array<i64: 1, 1>}, {pipeline_mode = #tpu.pipeline_mode<synchronous>, transform_indices = @transform_8, window_bounds = array<i64: 2, 1>}]} {
    %c0_i32 = arith.constant 0 : i32
    %0 = arith.cmpi eq, %arg0, %c0_i32 : i32
    %1 = arith.extui %0 : i1 to i32
    %c0_i32_0 = arith.constant 0 : i32
    %2 = arith.cmpi ne, %1, %c0_i32_0 : i32
    scf.if %2 {
      %cst_45 = arith.constant 0.000000e+00 : f32
      %178 = vector.broadcast %cst_45 : f32 to vector<2x64xf32>
      %c0_46 = arith.constant 0 : index
      %c0_47 = arith.constant 0 : index
      %179 = vector.load %arg10[%c0_46, %c0_47] : memref<2x64xf32, #tpu.memory_space<vmem>>, vector<2x64xf32>
      tpu.vector_store %arg10[%c0_46, %c0_47], %178 {strides = array<i32>} : memref<2x64xf32, #tpu.memory_space<vmem>>, vector<2x64xf32>,
      %cst_48 = arith.constant 0.000000e+00 : f32
      %180 = vector.broadcast %cst_48 : f32 to vector<2x64xf32>
      %c0_49 = arith.constant 0 : index
      %c0_50 = arith.constant 0 : index
      %181 = vector.load %arg11[%c0_49, %c0_50] : memref<2x64xf32, #tpu.memory_space<vmem>>, vector<2x64xf32>
      tpu.vector_store %arg11[%c0_49, %c0_50], %180 {strides = array<i32>} : memref<2x64xf32, #tpu.memory_space<vmem>>, vector<2x64xf32>,
      %cst_51 = arith.constant 0.000000e+00 : f32
      %182 = vector.broadcast %cst_51 : f32 to vector<2x64xf32>
      %c0_52 = arith.constant 0 : index
      %c0_53 = arith.constant 0 : index
      %183 = vector.load %arg12[%c0_52, %c0_53] : memref<2x64xf32, #tpu.memory_space<vmem>>, vector<2x64xf32>
      tpu.vector_store %arg12[%c0_52, %c0_53], %182 {strides = array<i32>} : memref<2x64xf32, #tpu.memory_space<vmem>>, vector<2x64xf32>,
      %cst_54 = arith.constant 0.000000e+00 : f32
      %184 = vector.broadcast %cst_54 : f32 to vector<2x64xf32>
      %c0_55 = arith.constant 0 : index
      %c0_56 = arith.constant 0 : index
      %185 = vector.load %arg13[%c0_55, %c0_56] : memref<2x64xf32, #tpu.memory_space<vmem>>, vector<2x64xf32>
      tpu.vector_store %arg13[%c0_55, %c0_56], %184 {strides = array<i32>} : memref<2x64xf32, #tpu.memory_space<vmem>>, vector<2x64xf32>,
    } else {
    }
    %c0 = arith.constant 0 : index
    %c0_1 = arith.constant 0 : index
    %3 = vector.load %arg3[%c0, %c0_1] : memref<64x256xf32, #tpu.memory_space<vmem>>, vector<64x256xf32>
    %c0_2 = arith.constant 0 : index
    %c0_3 = arith.constant 0 : index
    %4 = vector.load %arg5[%c0_2, %c0_3] : memref<128x256xf32, #tpu.memory_space<vmem>>, vector<128x256xf32>
    %c0_4 = arith.constant 0 : index
    %c0_5 = arith.constant 0 : index
    %5 = vector.load %arg6[%c0_4, %c0_5] : memref<1x256xf32, #tpu.memory_space<vmem>>, vector<1x256xf32>
    %6 = vector.shape_cast %5 : vector<1x256xf32> to vector<1x256xf32>
    %7 = vector.broadcast %6 : vector<1x256xf32> to vector<2x256xf32>
    %c0_6 = arith.constant 0 : index
    %c0_7 = arith.constant 0 : index
    %8 = vector.load %arg1[%c0_6, %c0_7] : memref<8x4xf32, #tpu.memory_space<vmem>>, vector<8x4xf32>
    %c0_8 = arith.constant 0 : index
    %c0_9 = arith.constant 0 : index
    %9 = vector.load %arg2[%c0_8, %c0_9] : memref<4x256xf32, #tpu.memory_space<vmem>>, vector<4x256xf32>
    %cst = arith.constant dense<0.000000e+00> : vector<8x256xf32>
    %10 = tpu.matmul %8, %9, %cst {dimension_numbers = #tpu.dot_dimension_numbers<[1], [0], [0], [1], [0, 0, 1, 1], [], []>} : vector<8x4xf32>, vector<4x256xf32>, vector<8x256xf32> -> vector<8x256xf32>
    %c0_10 = arith.constant 0 : index
    %c0_11 = arith.constant 0 : index
    %11 = vector.load %arg4[%c0_10, %c0_11] : memref<1x256xf32, #tpu.memory_space<vmem>>, vector<1x256xf32>
    %12 = vector.shape_cast %11 : vector<1x256xf32> to vector<1x256xf32>
    %13 = vector.broadcast %12 : vector<1x256xf32> to vector<8x256xf32>
    %14 = arith.addf %10, %13 : vector<8x256xf32>
    %c0_12 = arith.constant 0 : index
    %c0_13 = arith.constant 0 : index
    %15 = vector.load %arg10[%c0_12, %c0_13] : memref<2x64xf32, #tpu.memory_space<vmem>>, vector<2x64xf32>
    %c0_14 = arith.constant 0 : index
    %c0_15 = arith.constant 0 : index
    %16 = vector.load %arg11[%c0_14, %c0_15] : memref<2x64xf32, #tpu.memory_space<vmem>>, vector<2x64xf32>
    %c0_16 = arith.constant 0 : index
    %c0_17 = arith.constant 0 : index
    %17 = vector.load %arg12[%c0_16, %c0_17] : memref<2x64xf32, #tpu.memory_space<vmem>>, vector<2x64xf32>
    %c0_18 = arith.constant 0 : index
    %c0_19 = arith.constant 0 : index
    %18 = vector.load %arg13[%c0_18, %c0_19] : memref<2x64xf32, #tpu.memory_space<vmem>>, vector<2x64xf32>
    %19 = vector.extract_strided_slice %14 {offsets = [0, 0], sizes = [2, 256], strides = [1, 1]} : vector<8x256xf32> to vector<2x256xf32>
    %cst_20 = arith.constant dense<0.000000e+00> : vector<2x256xf32>
    %20 = tpu.matmul %15, %3, %cst_20 {dimension_numbers = #tpu.dot_dimension_numbers<[1], [0], [0], [1], [0, 0, 1, 1], [], []>} : vector<2x64xf32>, vector<64x256xf32>, vector<2x256xf32> -> vector<2x256xf32>
    %21 = arith.addf %19, %20 : vector<2x256xf32>
    %22 = vector.extract_strided_slice %21 {offsets = [0, 0], sizes = [2, 192], strides = [1, 1]} : vector<2x256xf32> to vector<2x192xf32>
    %23 = arith.negf %22 : vector<2x192xf32>
    %24 = math.exp %23 : vector<2x192xf32>
    %cst_21 = arith.constant 1.000000e+00 : f32
    %25 = vector.broadcast %cst_21 : f32 to vector<2x192xf32>
    %26 = arith.addf %25, %24 : vector<2x192xf32>
    %27 = arith.divf %25, %26 : vector<2x192xf32>
    %28 = vector.extract_strided_slice %27 {offsets = [0, 0], sizes = [2, 64], strides = [1, 1]} : vector<2x192xf32> to vector<2x64xf32>
    %29 = vector.extract_strided_slice %27 {offsets = [0, 64], sizes = [2, 64], strides = [1, 1]} : vector<2x192xf32> to vector<2x64xf32>
    %30 = vector.extract_strided_slice %27 {offsets = [0, 128], sizes = [2, 64], strides = [1, 1]} : vector<2x192xf32> to vector<2x64xf32>
    %31 = vector.extract_strided_slice %21 {offsets = [0, 192], sizes = [2, 64], strides = [1, 1]} : vector<2x256xf32> to vector<2x64xf32>
    %32 = math.tanh %31 : vector<2x64xf32>
    %33 = arith.mulf %29, %16 : vector<2x64xf32>
    %34 = arith.mulf %28, %32 : vector<2x64xf32>
    %35 = arith.addf %33, %34 : vector<2x64xf32>
    %36 = math.tanh %35 : vector<2x64xf32>
    %37 = arith.mulf %30, %36 : vector<2x64xf32>
    %38 = tpu.concatenate %37, %17 in 1 : vector<2x64xf32>, vector<2x64xf32> -> vector<2x128xf32>
    %cst_22 = arith.constant dense<0.000000e+00> : vector<2x256xf32>
    %39 = tpu.matmul %38, %4, %cst_22 {dimension_numbers = #tpu.dot_dimension_numbers<[1], [0], [0], [1], [0, 0, 1, 1], [], []>} : vector<2x128xf32>, vector<128x256xf32>, vector<2x256xf32> -> vector<2x256xf32>
    %40 = arith.addf %39, %7 : vector<2x256xf32>
    %41 = vector.extract_strided_slice %40 {offsets = [0, 0], sizes = [2, 192], strides = [1, 1]} : vector<2x256xf32> to vector<2x192xf32>
    %42 = arith.negf %41 : vector<2x192xf32>
    %43 = math.exp %42 : vector<2x192xf32>
    %cst_23 = arith.constant 1.000000e+00 : f32
    %44 = vector.broadcast %cst_23 : f32 to vector<2x192xf32>
    %45 = arith.addf %44, %43 : vector<2x192xf32>
    %46 = arith.divf %44, %45 : vector<2x192xf32>
    %47 = vector.extract_strided_slice %46 {offsets = [0, 0], sizes = [2, 64], strides = [1, 1]} : vector<2x192xf32> to vector<2x64xf32>
    %48 = vector.extract_strided_slice %46 {offsets = [0, 64], sizes = [2, 64], strides = [1, 1]} : vector<2x192xf32> to vector<2x64xf32>
    %49 = vector.extract_strided_slice %46 {offsets = [0, 128], sizes = [2, 64], strides = [1, 1]} : vector<2x192xf32> to vector<2x64xf32>
    %50 = vector.extract_strided_slice %40 {offsets = [0, 192], sizes = [2, 64], strides = [1, 1]} : vector<2x256xf32> to vector<2x64xf32>
    %51 = math.tanh %50 : vector<2x64xf32>
    %52 = arith.mulf %48, %18 : vector<2x64xf32>
    %53 = arith.mulf %47, %51 : vector<2x64xf32>
    %54 = arith.addf %52, %53 : vector<2x64xf32>
    %55 = math.tanh %54 : vector<2x64xf32>
    %56 = arith.mulf %49, %55 : vector<2x64xf32>
    %57 = vector.extract_strided_slice %14 {offsets = [2, 0], sizes = [2, 256], strides = [1, 1]} : vector<8x256xf32> to vector<2x256xf32>
    %cst_24 = arith.constant dense<0.000000e+00> : vector<2x256xf32>
    %58 = tpu.matmul %37, %3, %cst_24 {dimension_numbers = #tpu.dot_dimension_numbers<[1], [0], [0], [1], [0, 0, 1, 1], [], []>} : vector<2x64xf32>, vector<64x256xf32>, vector<2x256xf32> -> vector<2x256xf32>
    %59 = arith.addf %57, %58 : vector<2x256xf32>
    %60 = vector.extract_strided_slice %59 {offsets = [0, 0], sizes = [2, 192], strides = [1, 1]} : vector<2x256xf32> to vector<2x192xf32>
    %61 = arith.negf %60 : vector<2x192xf32>
    %62 = math.exp %61 : vector<2x192xf32>
    %cst_25 = arith.constant 1.000000e+00 : f32
    %63 = vector.broadcast %cst_25 : f32 to vector<2x192xf32>
    %64 = arith.addf %63, %62 : vector<2x192xf32>
    %65 = arith.divf %63, %64 : vector<2x192xf32>
    %66 = vector.extract_strided_slice %65 {offsets = [0, 0], sizes = [2, 64], strides = [1, 1]} : vector<2x192xf32> to vector<2x64xf32>
    %67 = vector.extract_strided_slice %65 {offsets = [0, 64], sizes = [2, 64], strides = [1, 1]} : vector<2x192xf32> to vector<2x64xf32>
    %68 = vector.extract_strided_slice %65 {offsets = [0, 128], sizes = [2, 64], strides = [1, 1]} : vector<2x192xf32> to vector<2x64xf32>
    %69 = vector.extract_strided_slice %59 {offsets = [0, 192], sizes = [2, 64], strides = [1, 1]} : vector<2x256xf32> to vector<2x64xf32>
    %70 = math.tanh %69 : vector<2x64xf32>
    %71 = arith.mulf %67, %35 : vector<2x64xf32>
    %72 = arith.mulf %66, %70 : vector<2x64xf32>
    %73 = arith.addf %71, %72 : vector<2x64xf32>
    %74 = math.tanh %73 : vector<2x64xf32>
    %75 = arith.mulf %68, %74 : vector<2x64xf32>
    %76 = tpu.concatenate %75, %56 in 1 : vector<2x64xf32>, vector<2x64xf32> -> vector<2x128xf32>
    %cst_26 = arith.constant dense<0.000000e+00> : vector<2x256xf32>
    %77 = tpu.matmul %76, %4, %cst_26 {dimension_numbers = #tpu.dot_dimension_numbers<[1], [0], [0], [1], [0, 0, 1, 1], [], []>} : vector<2x128xf32>, vector<128x256xf32>, vector<2x256xf32> -> vector<2x256xf32>
    %78 = arith.addf %77, %7 : vector<2x256xf32>
    %79 = vector.extract_strided_slice %78 {offsets = [0, 0], sizes = [2, 192], strides = [1, 1]} : vector<2x256xf32> to vector<2x192xf32>
    %80 = arith.negf %79 : vector<2x192xf32>
    %81 = math.exp %80 : vector<2x192xf32>
    %cst_27 = arith.constant 1.000000e+00 : f32
    %82 = vector.broadcast %cst_27 : f32 to vector<2x192xf32>
    %83 = arith.addf %82, %81 : vector<2x192xf32>
    %84 = arith.divf %82, %83 : vector<2x192xf32>
    %85 = vector.extract_strided_slice %84 {offsets = [0, 0], sizes = [2, 64], strides = [1, 1]} : vector<2x192xf32> to vector<2x64xf32>
    %86 = vector.extract_strided_slice %84 {offsets = [0, 64], sizes = [2, 64], strides = [1, 1]} : vector<2x192xf32> to vector<2x64xf32>
    %87 = vector.extract_strided_slice %84 {offsets = [0, 128], sizes = [2, 64], strides = [1, 1]} : vector<2x192xf32> to vector<2x64xf32>
    %88 = vector.extract_strided_slice %78 {offsets = [0, 192], sizes = [2, 64], strides = [1, 1]} : vector<2x256xf32> to vector<2x64xf32>
    %89 = math.tanh %88 : vector<2x64xf32>
    %90 = arith.mulf %86, %54 : vector<2x64xf32>
    %91 = arith.mulf %85, %89 : vector<2x64xf32>
    %92 = arith.addf %90, %91 : vector<2x64xf32>
    %93 = math.tanh %92 : vector<2x64xf32>
    %94 = arith.mulf %87, %93 : vector<2x64xf32>
    %95 = vector.extract_strided_slice %14 {offsets = [4, 0], sizes = [2, 256], strides = [1, 1]} : vector<8x256xf32> to vector<2x256xf32>
    %cst_28 = arith.constant dense<0.000000e+00> : vector<2x256xf32>
    %96 = tpu.matmul %75, %3, %cst_28 {dimension_numbers = #tpu.dot_dimension_numbers<[1], [0], [0], [1], [0, 0, 1, 1], [], []>} : vector<2x64xf32>, vector<64x256xf32>, vector<2x256xf32> -> vector<2x256xf32>
    %97 = arith.addf %95, %96 : vector<2x256xf32>
    %98 = vector.extract_strided_slice %97 {offsets = [0, 0], sizes = [2, 192], strides = [1, 1]} : vector<2x256xf32> to vector<2x192xf32>
    %99 = arith.negf %98 : vector<2x192xf32>
    %100 = math.exp %99 : vector<2x192xf32>
    %cst_29 = arith.constant 1.000000e+00 : f32
    %101 = vector.broadcast %cst_29 : f32 to vector<2x192xf32>
    %102 = arith.addf %101, %100 : vector<2x192xf32>
    %103 = arith.divf %101, %102 : vector<2x192xf32>
    %104 = vector.extract_strided_slice %103 {offsets = [0, 0], sizes = [2, 64], strides = [1, 1]} : vector<2x192xf32> to vector<2x64xf32>
    %105 = vector.extract_strided_slice %103 {offsets = [0, 64], sizes = [2, 64], strides = [1, 1]} : vector<2x192xf32> to vector<2x64xf32>
    %106 = vector.extract_strided_slice %103 {offsets = [0, 128], sizes = [2, 64], strides = [1, 1]} : vector<2x192xf32> to vector<2x64xf32>
    %107 = vector.extract_strided_slice %97 {offsets = [0, 192], sizes = [2, 64], strides = [1, 1]} : vector<2x256xf32> to vector<2x64xf32>
    %108 = math.tanh %107 : vector<2x64xf32>
    %109 = arith.mulf %105, %73 : vector<2x64xf32>
    %110 = arith.mulf %104, %108 : vector<2x64xf32>
    %111 = arith.addf %109, %110 : vector<2x64xf32>
    %112 = math.tanh %111 : vector<2x64xf32>
    %113 = arith.mulf %106, %112 : vector<2x64xf32>
    %114 = tpu.concatenate %113, %94 in 1 : vector<2x64xf32>, vector<2x64xf32> -> vector<2x128xf32>
    %cst_30 = arith.constant dense<0.000000e+00> : vector<2x256xf32>
    %115 = tpu.matmul %114, %4, %cst_30 {dimension_numbers = #tpu.dot_dimension_numbers<[1], [0], [0], [1], [0, 0, 1, 1], [], []>} : vector<2x128xf32>, vector<128x256xf32>, vector<2x256xf32> -> vector<2x256xf32>
    %116 = arith.addf %115, %7 : vector<2x256xf32>
    %117 = vector.extract_strided_slice %116 {offsets = [0, 0], sizes = [2, 192], strides = [1, 1]} : vector<2x256xf32> to vector<2x192xf32>
    %118 = arith.negf %117 : vector<2x192xf32>
    %119 = math.exp %118 : vector<2x192xf32>
    %cst_31 = arith.constant 1.000000e+00 : f32
    %120 = vector.broadcast %cst_31 : f32 to vector<2x192xf32>
    %121 = arith.addf %120, %119 : vector<2x192xf32>
    %122 = arith.divf %120, %121 : vector<2x192xf32>
    %123 = vector.extract_strided_slice %122 {offsets = [0, 0], sizes = [2, 64], strides = [1, 1]} : vector<2x192xf32> to vector<2x64xf32>
    %124 = vector.extract_strided_slice %122 {offsets = [0, 64], sizes = [2, 64], strides = [1, 1]} : vector<2x192xf32> to vector<2x64xf32>
    %125 = vector.extract_strided_slice %122 {offsets = [0, 128], sizes = [2, 64], strides = [1, 1]} : vector<2x192xf32> to vector<2x64xf32>
    %126 = vector.extract_strided_slice %116 {offsets = [0, 192], sizes = [2, 64], strides = [1, 1]} : vector<2x256xf32> to vector<2x64xf32>
    %127 = math.tanh %126 : vector<2x64xf32>
    %128 = arith.mulf %124, %92 : vector<2x64xf32>
    %129 = arith.mulf %123, %127 : vector<2x64xf32>
    %130 = arith.addf %128, %129 : vector<2x64xf32>
    %131 = math.tanh %130 : vector<2x64xf32>
    %132 = arith.mulf %125, %131 : vector<2x64xf32>
    %133 = vector.extract_strided_slice %14 {offsets = [6, 0], sizes = [2, 256], strides = [1, 1]} : vector<8x256xf32> to vector<2x256xf32>
    %cst_32 = arith.constant dense<0.000000e+00> : vector<2x256xf32>
    %134 = tpu.matmul %113, %3, %cst_32 {dimension_numbers = #tpu.dot_dimension_numbers<[1], [0], [0], [1], [0, 0, 1, 1], [], []>} : vector<2x64xf32>, vector<64x256xf32>, vector<2x256xf32> -> vector<2x256xf32>
    %135 = arith.addf %133, %134 : vector<2x256xf32>
    %136 = vector.extract_strided_slice %135 {offsets = [0, 0], sizes = [2, 192], strides = [1, 1]} : vector<2x256xf32> to vector<2x192xf32>
    %137 = arith.negf %136 : vector<2x192xf32>
    %138 = math.exp %137 : vector<2x192xf32>
    %cst_33 = arith.constant 1.000000e+00 : f32
    %139 = vector.broadcast %cst_33 : f32 to vector<2x192xf32>
    %140 = arith.addf %139, %138 : vector<2x192xf32>
    %141 = arith.divf %139, %140 : vector<2x192xf32>
    %142 = vector.extract_strided_slice %141 {offsets = [0, 0], sizes = [2, 64], strides = [1, 1]} : vector<2x192xf32> to vector<2x64xf32>
    %143 = vector.extract_strided_slice %141 {offsets = [0, 64], sizes = [2, 64], strides = [1, 1]} : vector<2x192xf32> to vector<2x64xf32>
    %144 = vector.extract_strided_slice %141 {offsets = [0, 128], sizes = [2, 64], strides = [1, 1]} : vector<2x192xf32> to vector<2x64xf32>
    %145 = vector.extract_strided_slice %135 {offsets = [0, 192], sizes = [2, 64], strides = [1, 1]} : vector<2x256xf32> to vector<2x64xf32>
    %146 = math.tanh %145 : vector<2x64xf32>
    %147 = arith.mulf %143, %111 : vector<2x64xf32>
    %148 = arith.mulf %142, %146 : vector<2x64xf32>
    %149 = arith.addf %147, %148 : vector<2x64xf32>
    %150 = math.tanh %149 : vector<2x64xf32>
    %151 = arith.mulf %144, %150 : vector<2x64xf32>
    %152 = tpu.concatenate %151, %132 in 1 : vector<2x64xf32>, vector<2x64xf32> -> vector<2x128xf32>
    %cst_34 = arith.constant dense<0.000000e+00> : vector<2x256xf32>
    %153 = tpu.matmul %152, %4, %cst_34 {dimension_numbers = #tpu.dot_dimension_numbers<[1], [0], [0], [1], [0, 0, 1, 1], [], []>} : vector<2x128xf32>, vector<128x256xf32>, vector<2x256xf32> -> vector<2x256xf32>
    %154 = arith.addf %153, %7 : vector<2x256xf32>
    %155 = vector.extract_strided_slice %154 {offsets = [0, 0], sizes = [2, 192], strides = [1, 1]} : vector<2x256xf32> to vector<2x192xf32>
    %156 = arith.negf %155 : vector<2x192xf32>
    %157 = math.exp %156 : vector<2x192xf32>
    %cst_35 = arith.constant 1.000000e+00 : f32
    %158 = vector.broadcast %cst_35 : f32 to vector<2x192xf32>
    %159 = arith.addf %158, %157 : vector<2x192xf32>
    %160 = arith.divf %158, %159 : vector<2x192xf32>
    %161 = vector.extract_strided_slice %160 {offsets = [0, 0], sizes = [2, 64], strides = [1, 1]} : vector<2x192xf32> to vector<2x64xf32>
    %162 = vector.extract_strided_slice %160 {offsets = [0, 64], sizes = [2, 64], strides = [1, 1]} : vector<2x192xf32> to vector<2x64xf32>
    %163 = vector.extract_strided_slice %160 {offsets = [0, 128], sizes = [2, 64], strides = [1, 1]} : vector<2x192xf32> to vector<2x64xf32>
    %164 = vector.extract_strided_slice %154 {offsets = [0, 192], sizes = [2, 64], strides = [1, 1]} : vector<2x256xf32> to vector<2x64xf32>
    %165 = math.tanh %164 : vector<2x64xf32>
    %166 = arith.mulf %162, %130 : vector<2x64xf32>
    %167 = arith.mulf %161, %165 : vector<2x64xf32>
    %168 = arith.addf %166, %167 : vector<2x64xf32>
    %169 = math.tanh %168 : vector<2x64xf32>
    %170 = arith.mulf %163, %169 : vector<2x64xf32>
    %c0_36 = arith.constant 0 : index
    %c0_37 = arith.constant 0 : index
    %171 = vector.load %arg10[%c0_36, %c0_37] : memref<2x64xf32, #tpu.memory_space<vmem>>, vector<2x64xf32>
    tpu.vector_store %arg10[%c0_36, %c0_37], %151 {strides = array<i32>} : memref<2x64xf32, #tpu.memory_space<vmem>>, vector<2x64xf32>,
    %c0_38 = arith.constant 0 : index
    %c0_39 = arith.constant 0 : index
    %172 = vector.load %arg11[%c0_38, %c0_39] : memref<2x64xf32, #tpu.memory_space<vmem>>, vector<2x64xf32>
    tpu.vector_store %arg11[%c0_38, %c0_39], %149 {strides = array<i32>} : memref<2x64xf32, #tpu.memory_space<vmem>>, vector<2x64xf32>,
    %c0_40 = arith.constant 0 : index
    %c0_41 = arith.constant 0 : index
    %173 = vector.load %arg12[%c0_40, %c0_41] : memref<2x64xf32, #tpu.memory_space<vmem>>, vector<2x64xf32>
    tpu.vector_store %arg12[%c0_40, %c0_41], %170 {strides = array<i32>} : memref<2x64xf32, #tpu.memory_space<vmem>>, vector<2x64xf32>,
    %c0_42 = arith.constant 0 : index
    %c0_43 = arith.constant 0 : index
    %174 = vector.load %arg13[%c0_42, %c0_43] : memref<2x64xf32, #tpu.memory_space<vmem>>, vector<2x64xf32>
    tpu.vector_store %arg13[%c0_42, %c0_43], %168 {strides = array<i32>} : memref<2x64xf32, #tpu.memory_space<vmem>>, vector<2x64xf32>,
    %c1_i32 = arith.constant 1 : i32
    %175 = arith.cmpi eq, %arg0, %c1_i32 : i32
    %176 = arith.extui %175 : i1 to i32
    %c0_i32_44 = arith.constant 0 : i32
    %177 = arith.cmpi ne, %176, %c0_i32_44 : i32
    scf.if %177 {
      %c0_45 = arith.constant 0 : index
      %c0_46 = arith.constant 0 : index
      %178 = vector.load %arg7[%c0_45, %c0_46] : memref<64x1xf32, #tpu.memory_space<vmem>>, vector<64x1xf32>
      %cst_47 = arith.constant dense<0.000000e+00> : vector<2x1xf32>
      %179 = tpu.matmul %170, %178, %cst_47 {dimension_numbers = #tpu.dot_dimension_numbers<[1], [0], [0], [1], [0, 0, 1, 1], [], []>} : vector<2x64xf32>, vector<64x1xf32>, vector<2x1xf32> -> vector<2x1xf32>
      %c0_48 = arith.constant 0 : index
      %c0_49 = arith.constant 0 : index
      %180 = vector.load %arg8[%c0_48, %c0_49] : memref<1x1xf32, #tpu.memory_space<vmem>>, vector<1x1xf32>
      %181 = vector.broadcast %180 : vector<1x1xf32> to vector<2x1xf32>
      %182 = arith.addf %179, %181 : vector<2x1xf32>
      %c0_50 = arith.constant 0 : index
      %c0_51 = arith.constant 0 : index
      %183 = vector.load %arg9[%c0_50, %c0_51] : memref<2x1xf32, #tpu.memory_space<vmem>>, vector<2x1xf32>
      tpu.vector_store %arg9[%c0_50, %c0_51], %182 {strides = array<i32>} : memref<2x1xf32, #tpu.memory_space<vmem>>, vector<2x1xf32>,
    } else {
    }
    return
  }
  func.func @transform_0(%arg0: i32) -> (i32, i32) {
    %c0_i32 = arith.constant 0 : i32
    %c0_i32_0 = arith.constant 0 : i32
    return %arg0, %c0_i32 : i32, i32
  }
  func.func @transform_1(%arg0: i32) -> (i32, i32) {
    %c0_i32 = arith.constant 0 : i32
    %c0_i32_0 = arith.constant 0 : i32
    %c0_i32_1 = arith.constant 0 : i32
    return %c0_i32, %c0_i32_0 : i32, i32
  }
  func.func @transform_2(%arg0: i32) -> (i32, i32) {
    %c0_i32 = arith.constant 0 : i32
    %c0_i32_0 = arith.constant 0 : i32
    %c0_i32_1 = arith.constant 0 : i32
    return %c0_i32, %c0_i32_0 : i32, i32
  }
  func.func @transform_3(%arg0: i32) -> (i32, i32) {
    %c0_i32 = arith.constant 0 : i32
    %c0_i32_0 = arith.constant 0 : i32
    %c0_i32_1 = arith.constant 0 : i32
    return %c0_i32, %c0_i32_0 : i32, i32
  }
  func.func @transform_4(%arg0: i32) -> (i32, i32) {
    %c0_i32 = arith.constant 0 : i32
    %c0_i32_0 = arith.constant 0 : i32
    %c0_i32_1 = arith.constant 0 : i32
    return %c0_i32, %c0_i32_0 : i32, i32
  }
  func.func @transform_5(%arg0: i32) -> (i32, i32) {
    %c0_i32 = arith.constant 0 : i32
    %c0_i32_0 = arith.constant 0 : i32
    %c0_i32_1 = arith.constant 0 : i32
    return %c0_i32, %c0_i32_0 : i32, i32
  }
  func.func @transform_6(%arg0: i32) -> (i32, i32) {
    %c0_i32 = arith.constant 0 : i32
    %c0_i32_0 = arith.constant 0 : i32
    %c0_i32_1 = arith.constant 0 : i32
    return %c0_i32, %c0_i32_0 : i32, i32
  }
  func.func @transform_7(%arg0: i32) -> (i32, i32) {
    %c0_i32 = arith.constant 0 : i32
    %c0_i32_0 = arith.constant 0 : i32
    %c0_i32_1 = arith.constant 0 : i32
    return %c0_i32, %c0_i32_0 : i32, i32
  }
  func.func @transform_8(%arg0: i32) -> (i32, i32) {
    %c0_i32 = arith.constant 0 : i32
    %c0_i32_0 = arith.constant 0 : i32
    %c0_i32_1 = arith.constant 0 : i32
    return %c0_i32, %c0_i32_0 : i32, i32
  }
}

</mosaic_0001>

<llo_original>
// kernel: tpu_custom_call.1
$region0: #{tpu_custom_call.1}
  #allocation0 [shape = 'u32[]', space=smem, size = 0x4, offset = 0x4, fixed_abs, tag = 'smem constant byte address 0x4 - core index']
  #allocation1 [shape = 'u32[144,128]{1,0:T(1,128)}', space=vmem, size = 0x12000, scoped, tag = 'internal scratch']
  #allocation2 [shape = 'f32[2,64]{1,0:T(2,128)}', space=vmem, size = 0x400, scoped, tag = 'scratch operand']
  #allocation3 [shape = 'f32[2,64]{1,0:T(2,128)}', space=vmem, size = 0x400, scoped, tag = 'scratch operand']
  #allocation4 [shape = 'f32[2,64]{1,0:T(2,128)}', space=vmem, size = 0x400, scoped, tag = 'scratch operand']
  #allocation5 [shape = 'f32[2,64]{1,0:T(2,128)}', space=vmem, size = 0x400, scoped, tag = 'scratch operand']
  #allocation6 [shape = 'f32[1,1]{1,0:T(1,128)S(1)}', space=vmem, size = 0x200, scoped, tag = 'scoped memory for tpu_custom_call.1']
  %s0 = inlined_call_operand.vmem [shape: f32[16,4], index: 0, kind: input, shape index: {}]
  %s1 = inlined_call_operand.vmem [shape: f32[4,256], index: 1, kind: input, shape index: {}]
  %s2 = inlined_call_operand.hbm [shape: f32[64,256], index: 2, kind: input, shape index: {}]
  %s3 = inlined_call_operand.vmem [shape: f32[1,256], index: 3, kind: input, shape index: {}]
  %s4 = inlined_call_operand.hbm [shape: f32[128,256], index: 4, kind: input, shape index: {}]
  %s5 = inlined_call_operand.vmem [shape: f32[1,256], index: 5, kind: input, shape index: {}]
  %s6 = inlined_call_operand.vmem [shape: f32[64,1], index: 6, kind: input, shape index: {}]
  %s7 = inlined_call_operand.<no memory space> [shape: f32[1,1], index: 7, kind: input, shape index: {}]
  %s8 = inlined_call_operand.vmem [shape: f32[2,1], index: 8, kind: output, shape index: {}]
  %s9 = sld [smem:[#allocation0]]
  $region81: #{tpu_custom_call.1} parent=0
    _
  %s11 = ssub.s32 1, %s9
  %s12 = scalar_select 0, %s11, %s9
  %v13 = vstv %s7
  %14 = vst [vmem:[#allocation6] sm:$0x1] %v13
  $region1: #{tpu_custom_call.1} parent=0
    #allocation7 [shape = 'u8[65536]{0}', space=vmem, size = 0x10000, scoped, tag = 'input window, operand 2, single buffered']
    #allocation8 [shape = 's32[2]{0}', space=sflag, size = 0x8, scoped, tag = 'scoped memory for tpu_custom_call.1']
    #allocation9 [shape = 'u8[131072]{0}', space=vmem, size = 0x20000, scoped, tag = 'input window, operand 4, single buffered']
    #allocation10 [shape = 's32[1]{0}', space=sflag, size = 0x4, scoped, tag = 'scoped memory for tpu_custom_call.1']
    %15 = vsyncpa [#allocation8], 0
    %16 = vsyncpa [#allocation10], 0
    loop: start=0, step=1, limit=4
    $region2: #{tpu_custom_call.1} parent=1 // loop_pre_header
      _
    $region3: #{tpu_custom_call.1} parent=1 // loop_header
      %s18 = sphi 0, %s22
      %p19 = scmp.ge.s32.totalorder %s18, 4
      %s28 = sphi 0, %s30
      %s31 = sphi 0, %s28
      %s32 = sphi 0, %s31
      %s48 = sphi 0, %s32
      %s52 = sphi 0, %s52
      %s54 = sphi 0, %s52
      %s55 = sphi 0, %s54
      %s69 = sphi 0, %s55
      %s73 = sphi 0, %s73
      %s75 = sphi 0, %s73
      %s76 = sphi 0, %s75
      %s90 = sphi 0, %s76
      %s94 = sphi 0, %s94
      %s96 = sphi 0, %s94
      %s97 = sphi 0, %s96
      %s111 = sphi 0, %s97
      %s115 = sphi 0, %s115
      %s117 = sphi 0, %s115
      %s118 = sphi 0, %s117
      %s132 = sphi 0, %s118
      %s136 = sphi 0, %s136
      %s138 = sphi 0, %s136
      %s139 = sphi 0, %s138
      %s153 = sphi 0, %s139
      %s157 = sphi 0, %s157
      %s159 = sphi 0, %s157
      %s160 = sphi 0, %s159
      %s174 = sphi 0, %s160
      %s178 = sphi 0, %s178
      %s180 = sphi 0, %s178
      %s181 = sphi 0, %s180
      %s195 = sphi 0, %s181
      %s199 = sphi 0, %s199
      %s201 = sphi 0, %s199
      %s202 = sphi 0, %s201
      %s216 = sphi 0, %s202
    $region4: #{tpu_custom_call.1} parent=1 // loop_header_branch
      %21 = sbr.rel (%p19) target = $region8
    $region5: #{tpu_custom_call.1} parent=1 // loop_body
      %s23 = ssub.s32 %s18, 1
      %s24 = ssub.s32 %s18, 2
      %s25 = sadd.s32 %s18, 1
      %s26 = ssub.s32 %s18, %s25
      %p27 = scmp.eq.s32.totalorder %s26, 0
      %s29 = sadd.s32 %s28, 1
      %s30 = scalar_select %p27, %s28, %s29
      %p33 = pneg %p27
      %p34 = scmp.eq.s32.totalorder %s18, 1
      %p35 = por %p33, %p34
      %p36 = scmp.ne.s32.totalorder %s28, %s31
      %p37 = scmp.eq.s32.totalorder %s18, 0
      %p38 = por %p36, %p37
      %p39 = scmp.ne.s32.totalorder %s28, %s31
      %p40 = scmp.eq.s32.totalorder %s23, 1
      %p41 = por %p39, %p40
      %p42 = scmp.ne.s32.totalorder %s31, %s32
      %p43 = scmp.eq.s32.totalorder %s23, 0
      %p44 = por %p42, %p43
      %p45 = scmp.ne.s32.totalorder %s31, %s32
      %p46 = scmp.eq.s32.totalorder %s24, 1
      %p47 = por %p45, %p46
      %p49 = scmp.ne.s32.totalorder %s32, %s48
      %p50 = scmp.eq.s32.totalorder %s24, 0
      %p51 = por %p49, %p50
      %s53 = sadd.s32 %s52, 1
      %p56 = scmp.eq.s32.totalorder %s18, 1
      %p57 = scmp.ne.s32.totalorder %s52, %s54
      %p58 = scmp.eq.s32.totalorder %s18, 0
      %p59 = por %p57, %p58
      %p60 = scmp.ne.s32.totalorder %s52, %s54
      %p61 = scmp.eq.s32.totalorder %s23, 1
      %p62 = por %p60, %p61
      %p63 = scmp.ne.s32.totalorder %s54, %s55
      %p64 = scmp.eq.s32.totalorder %s23, 0
      %p65 = por %p63, %p64
      %p66 = scmp.ne.s32.totalorder %s54, %s55
      %p67 = scmp.eq.s32.totalorder %s24, 1
      %p68 = por %p66, %p67
      %p70 = scmp.ne.s32.totalorder %s55, %s69
      %p71 = scmp.eq.s32.totalorder %s24, 0
      %p72 = por %p70, %p71
      %s74 = sadd.s32 %s73, 1
      %p77 = scmp.eq.s32.totalorder %s18, 1
      %p78 = scmp.ne.s32.totalorder %s73, %s75
      %p79 = scmp.eq.s32.totalorder %s18, 0
      %p80 = por %p78, %p79
      %p81 = scmp.ne.s32.totalorder %s73, %s75
      %p82 = scmp.eq.s32.totalorder %s23, 1
      %p83 = por %p81, %p82
      %p84 = scmp.ne.s32.totalorder %s75, %s76
      %p85 = scmp.eq.s32.totalorder %s23, 0
      %p86 = por %p84, %p85
      %p87 = scmp.ne.s32.totalorder %s75, %s76
      %p88 = scmp.eq.s32.totalorder %s24, 1
      %p89 = por %p87, %p88
      %p91 = scmp.ne.s32.totalorder %s76, %s90
      %p92 = scmp.eq.s32.totalorder %s24, 0
      %p93 = por %p91, %p92
      %s95 = sadd.s32 %s94, 1
      %p98 = scmp.eq.s32.totalorder %s18, 1
      %p99 = scmp.ne.s32.totalorder %s94, %s96
      %p100 = scmp.eq.s32.totalorder %s18, 0
      %p101 = por %p99, %p100
      %p102 = scmp.ne.s32.totalorder %s94, %s96
      %p103 = scmp.eq.s32.totalorder %s23, 1
      %p104 = por %p102, %p103
      %p105 = scmp.ne.s32.totalorder %s96, %s97
      %p106 = scmp.eq.s32.totalorder %s23, 0
      %p107 = por %p105, %p106
      %p108 = scmp.ne.s32.totalorder %s96, %s97
      %p109 = scmp.eq.s32.totalorder %s24, 1
      %p110 = por %p108, %p109
      %p112 = scmp.ne.s32.totalorder %s97, %s111
      %p113 = scmp.eq.s32.totalorder %s24, 0
      %p114 = por %p112, %p113
      %s116 = sadd.s32 %s115, 1
      %p119 = scmp.eq.s32.totalorder %s18, 1
      %p120 = scmp.ne.s32.totalorder %s115, %s117
      %p121 = scmp.eq.s32.totalorder %s18, 0
      %p122 = por %p120, %p121
      %p123 = scmp.ne.s32.totalorder %s115, %s117
      %p124 = scmp.eq.s32.totalorder %s23, 1
      %p125 = por %p123, %p124
      %p126 = scmp.ne.s32.totalorder %s117, %s118
      %p127 = scmp.eq.s32.totalorder %s23, 0
      %p128 = por %p126, %p127
      %p129 = scmp.ne.s32.totalorder %s117, %s118
      %p130 = scmp.eq.s32.totalorder %s24, 1
      %p131 = por %p129, %p130
      %p133 = scmp.ne.s32.totalorder %s118, %s132
      %p134 = scmp.eq.s32.totalorder %s24, 0
      %p135 = por %p133, %p134
      %s137 = sadd.s32 %s136, 1
      %p140 = scmp.eq.s32.totalorder %s18, 1
      %p141 = scmp.ne.s32.totalorder %s136, %s138
      %p142 = scmp.eq.s32.totalorder %s18, 0
      %p143 = por %p141, %p142
      %p144 = scmp.ne.s32.totalorder %s136, %s138
      %p145 = scmp.eq.s32.totalorder %s23, 1
      %p146 = por %p144, %p145
      %p147 = scmp.ne.s32.totalorder %s138, %s139
      %p148 = scmp.eq.s32.totalorder %s23, 0
      %p149 = por %p147, %p148
      %p150 = scmp.ne.s32.totalorder %s138, %s139
      %p151 = scmp.eq.s32.totalorder %s24, 1
      %p152 = por %p150, %p151
      %p154 = scmp.ne.s32.totalorder %s139, %s153
      %p155 = scmp.eq.s32.totalorder %s24, 0
      %p156 = por %p154, %p155
      %s158 = sadd.s32 %s157, 1
      %p161 = scmp.eq.s32.totalorder %s18, 1
      %p162 = scmp.ne.s32.totalorder %s157, %s159
      %p163 = scmp.eq.s32.totalorder %s18, 0
      %p164 = por %p162, %p163
      %p165 = scmp.ne.s32.totalorder %s157, %s159
      %p166 = scmp.eq.s32.totalorder %s23, 1
      %p167 = por %p165, %p166
      %p168 = scmp.ne.s32.totalorder %s159, %s160
      %p169 = scmp.eq.s32.totalorder %s23, 0
      %p170 = por %p168, %p169
      %p171 = scmp.ne.s32.totalorder %s159, %s160
      %p172 = scmp.eq.s32.totalorder %s24, 1
      %p173 = por %p171, %p172
      %p175 = scmp.ne.s32.totalorder %s160, %s174
      %p176 = scmp.eq.s32.totalorder %s24, 0
      %p177 = por %p175, %p176
      %s179 = sadd.s32 %s178, 1
      %p182 = scmp.eq.s32.totalorder %s18, 1
      %p183 = scmp.ne.s32.totalorder %s178, %s180
      %p184 = scmp.eq.s32.totalorder %s18, 0
      %p185 = por %p183, %p184
      %p186 = scmp.ne.s32.totalorder %s178, %s180
      %p187 = scmp.eq.s32.totalorder %s23, 1
      %p188 = por %p186, %p187
      %p189 = scmp.ne.s32.totalorder %s180, %s181
      %p190 = scmp.eq.s32.totalorder %s23, 0
      %p191 = por %p189, %p190
      %p192 = scmp.ne.s32.totalorder %s180, %s181
      %p193 = scmp.eq.s32.totalorder %s24, 1
      %p194 = por %p192, %p193
      %p196 = scmp.ne.s32.totalorder %s181, %s195
      %p197 = scmp.eq.s32.totalorder %s24, 0
      %p198 = por %p196, %p197
      %s200 = sadd.s32 %s199, 1
      %p203 = scmp.eq.s32.totalorder %s18, 1
      %p204 = scmp.ne.s32.totalorder %s199, %s201
      %p205 = scmp.eq.s32.totalorder %s18, 0
      %p206 = por %p204, %p205
      %p207 = scmp.ne.s32.totalorder %s199, %s201
      %p208 = scmp.eq.s32.totalorder %s23, 1
      %p209 = por %p207, %p208
      %p210 = scmp.ne.s32.totalorder %s201, %s202
      %p211 = scmp.eq.s32.totalorder %s23, 0
      %p212 = por %p210, %p211
      %p213 = scmp.ne.s32.totalorder %s201, %s202
      %p214 = scmp.eq.s32.totalorder %s24, 1
      %p215 = por %p213, %p214
      %p217 = scmp.ne.s32.totalorder %s202, %s216
      %p218 = scmp.eq.s32.totalorder %s24, 0
      %p219 = por %p217, %p218
      %p220 = scmp.le.s32.totalorder 1, %s18
      %p221 = scmp.lt.s32.totalorder %s18, 3
      %p222 = pnand %p220, %p221
      %p223 = pneg %p222
      // Predicated region
      $region9: #{tpu_custom_call.1} parent=5 // pred_check
        _
      $region10: #{tpu_custom_call.1} parent=5 // pred_check_branch
        %225 = sbr.rel (%p222) target = $region12
      $region11: #{tpu_custom_call.1} parent=5 // pred_region
        %s226 = ssub.s32 %s18, 1
        // Predicated region
        $region13: #{tpu_custom_call.1} parent=11 // pred_check
          %p227 = pneg %p65
        $region14: #{tpu_custom_call.1} parent=11 // pred_check_branch
          %229 = sbr.rel (%p227) target = $region16
        $region15: #{tpu_custom_call.1} parent=11 // pred_region
          _
        $region16: #{tpu_custom_call.1} parent=11 // pred_fallthru
          _
        // Predicated region
        $region17: #{tpu_custom_call.1} parent=11 // pred_check
          %p230 = pneg %p86
        $region18: #{tpu_custom_call.1} parent=11 // pred_check_branch
          %232 = sbr.rel (%p230) target = $region20
        $region19: #{tpu_custom_call.1} parent=11 // pred_region
          %s234 = ssub.s32 2048, 2048
          %235 = vsyncadd [#allocation8], %s234
          %s236 = sshll.u32 [#allocation7], 4
          %s237 = int_to_ptr.vmem [resolvable:$true] %s236
          %242 = dma.hbm_to_vmem [thread:$0]  %s2, 2048, %s237, [#allocation8], 256, 256, 16
        $region20: #{tpu_custom_call.1} parent=11 // pred_fallthru
          _
        // Predicated region
        $region21: #{tpu_custom_call.1} parent=11 // pred_check
          %p243 = pneg %p107
        $region22: #{tpu_custom_call.1} parent=11 // pred_check_branch
          %245 = sbr.rel (%p243) target = $region24
        $region23: #{tpu_custom_call.1} parent=11 // pred_region
          _
        $region24: #{tpu_custom_call.1} parent=11 // pred_fallthru
          _
        // Predicated region
        $region25: #{tpu_custom_call.1} parent=11 // pred_check
          %p246 = pneg %p128
        $region26: #{tpu_custom_call.1} parent=11 // pred_check_branch
          %248 = sbr.rel (%p246) target = $region28
        $region27: #{tpu_custom_call.1} parent=11 // pred_region
          %s250 = ssub.s32 4096, 4096
          %251 = vsyncadd [#allocation10], %s250
          %s252 = sshll.u32 [#allocation9], 4
          %s253 = int_to_ptr.vmem [resolvable:$true] %s252
          %258 = dma.hbm_to_vmem [thread:$0]  %s4, 4096, %s253, [#allocation10], 256, 256, 16
        $region28: #{tpu_custom_call.1} parent=11 // pred_fallthru
          _
        // Predicated region
        $region29: #{tpu_custom_call.1} parent=11 // pred_check
          %p259 = pneg %p149
        $region30: #{tpu_custom_call.1} parent=11 // pred_check_branch
          %261 = sbr.rel (%p259) target = $region32
        $region31: #{tpu_custom_call.1} parent=11 // pred_region
          _
        $region32: #{tpu_custom_call.1} parent=11 // pred_fallthru
          _
        // Predicated region
        $region33: #{tpu_custom_call.1} parent=11 // pred_check
          %p262 = pneg %p170
        $region34: #{tpu_custom_call.1} parent=11 // pred_check_branch
          %264 = sbr.rel (%p262) target = $region36
        $region35: #{tpu_custom_call.1} parent=11 // pred_region
          _
        $region36: #{tpu_custom_call.1} parent=11 // pred_fallthru
          _
        // Predicated region
        $region37: #{tpu_custom_call.1} parent=11 // pred_check
          %p265 = pneg %p191
        $region38: #{tpu_custom_call.1} parent=11 // pred_check_branch
          %267 = sbr.rel (%p265) target = $region40
        $region39: #{tpu_custom_call.1} parent=11 // pred_region
          _
        $region40: #{tpu_custom_call.1} parent=11 // pred_fallthru
          _
      $region12: #{tpu_custom_call.1} parent=5 // pred_fallthru
        _
      %p268 = scmp.lt.s32.totalorder %s18, 2
      // Predicated region
      $region41: #{tpu_custom_call.1} parent=5 // pred_check
        %p269 = pneg %p268
      $region42: #{tpu_custom_call.1} parent=5 // pred_check_branch
        %271 = sbr.rel (%p269) target = $region44
      $region43: #{tpu_custom_call.1} parent=5 // pred_region
        // Predicated region
        $region45: #{tpu_custom_call.1} parent=43 // pred_check
          %p272 = pneg %p38
        $region46: #{tpu_custom_call.1} parent=43 // pred_check_branch
          %274 = sbr.rel (%p272) target = $region48
        $region47: #{tpu_custom_call.1} parent=43 // pred_region
          %p275 = scmp.lt.s32.totalorder %s18, 1
          %s276 = scalar_select %p275, %s18, 1
          %s277 = smul.addr %s276, 8
          %s278 = scalar_lea.vmem %s0, %s277
        $region48: #{tpu_custom_call.1} parent=43 // pred_fallthru
          _
      $region44: #{tpu_custom_call.1} parent=5 // pred_fallthru
        _
      %p279 = scmp.le.s32.totalorder 1, %s18
      %p280 = scmp.lt.s32.totalorder %s18, 3
      %p281 = pnand %p279, %p280
      %p282 = pneg %p281
      // Predicated region
      $region49: #{tpu_custom_call.1} parent=5 // pred_check
        _
      $region50: #{tpu_custom_call.1} parent=5 // pred_check_branch
        %284 = sbr.rel (%p281) target = $region52
      $region51: #{tpu_custom_call.1} parent=5 // pred_region
        %s285 = ssub.s32 %s18, 1
        // Predicated region
        $region53: #{tpu_custom_call.1} parent=51 // pred_check
          %p286 = pneg %p86
        $region54: #{tpu_custom_call.1} parent=51 // pred_check_branch
          %288 = sbr.rel (%p286) target = $region56
        $region55: #{tpu_custom_call.1} parent=51 // pred_region
          %289 = dma.done [#allocation8], 2048
        $region56: #{tpu_custom_call.1} parent=51 // pred_fallthru
          _
        // Predicated region
        $region57: #{tpu_custom_call.1} parent=51 // pred_check
          %p290 = pneg %p128
        $region58: #{tpu_custom_call.1} parent=51 // pred_check_branch
          %292 = sbr.rel (%p290) target = $region60
        $region59: #{tpu_custom_call.1} parent=51 // pred_region
          %293 = dma.done [#allocation10], 4096
        $region60: #{tpu_custom_call.1} parent=51 // pred_fallthru
          _
        %p294 = scmp.lt.s32.totalorder %s23, 1
        %s295 = scalar_select %p294, %s23, 1
        %s296 = smul.addr %s295, 8
        %s297 = scalar_lea.vmem %s0, %s296
        %p298 = pneg %p44
        %p299 = pneg %p41
        %p300 = pneg %p65
        %p301 = pneg %p62
        %p302 = pneg %p86
        %p303 = pneg %p83
        %p304 = pneg %p107
        %p305 = pneg %p104
        %p306 = pneg %p128
        %p307 = pneg %p125
        %p308 = pneg %p149
        %p309 = pneg %p146
        %p310 = pneg %p170
        %p311 = pneg %p167
        %p312 = pneg %p191
        %p313 = pneg %p188
        %p314 = pneg %p212
        %p315 = pneg %p209
        %p316 = scmp.lt.s32.totalorder %s23, 1
        %s317 = scalar_select %p316, %s23, 1
        %s318 = smul.addr %s317, 8
        %s319 = scalar_lea.vmem %s0, %s318
        %p320 = scmp.eq.s32.totalorder %s23, 0
        // Predicated region
        $region61: #{tpu_custom_call.1} parent=51 // pred_check
          %p321 = pneg %p320
        $region62: #{tpu_custom_call.1} parent=51 // pred_check_branch
          %323 = sbr.rel (%p321) target = $region64
        $region63: #{tpu_custom_call.1} parent=51 // pred_region
          %vm324 = vcmask 517120
          %325 = vst.msk [vmem:[#allocation2] sm:$0x3] %vm324, 0.0
          %326 = vst.msk [vmem:[#allocation3] sm:$0x3] %vm324, 0.0
          %327 = vst.msk [vmem:[#allocation4] sm:$0x3] %vm324, 0.0
          %328 = vst.msk [vmem:[#allocation5] sm:$0x3] %vm324, 0.0
        $region64: #{tpu_custom_call.1} parent=51 // pred_fallthru
          _
        %v329 = vld [vmem:[#allocation7] sm:$0xff]
        %v330 = vld [vmem:[#allocation7 + $0x8] sm:$0xff]
        %v331 = vld [vmem:[#allocation7 + $0x10] sm:$0xff]
        %v332 = vld [vmem:[#allocation7 + $0x18] sm:$0xff]
        %v333 = vld [vmem:[#allocation7 + $0x20] sm:$0xff]
        %v334 = vld [vmem:[#allocation7 + $0x28] sm:$0xff]
        %v335 = vld [vmem:[#allocation7 + $0x30] sm:$0xff]
        %v336 = vld [vmem:[#allocation7 + $0x38] sm:$0xff]
        %v337 = vld [vmem:[#allocation7 + $0x40] sm:$0xff]
        %v338 = vld [vmem:[#allocation7 + $0x48] sm:$0xff]
        %v339 = vld [vmem:[#allocation7 + $0x50] sm:$0xff]
        %v340 = vld [vmem:[#allocation7 + $0x58] sm:$0xff]
        %v341 = vld [vmem:[#allocation7 + $0x60] sm:$0xff]
        %v342 = vld [vmem:[#allocation7 + $0x68] sm:$0xff]
        %v343 = vld [vmem:[#allocation7 + $0x70] sm:$0xff]
        %v344 = vld [vmem:[#allocation7 + $0x78] sm:$0xff]
        %v345 = vld [vmem:[#allocation9] sm:$0xff]
        %v346 = vld [vmem:[#allocation9 + $0x8] sm:$0xff]
        %v347 = vld [vmem:[#allocation9 + $0x10] sm:$0xff]
        %v348 = vld [vmem:[#allocation9 + $0x18] sm:$0xff]
        %v349 = vld [vmem:[#allocation9 + $0x20] sm:$0xff]
        %v350 = vld [vmem:[#allocation9 + $0x28] sm:$0xff]
        %v351 = vld [vmem:[#allocation9 + $0x30] sm:$0xff]
        %v352 = vld [vmem:[#allocation9 + $0x38] sm:$0xff]
        %v353 = vld [vmem:[#allocation9 + $0x40] sm:$0xff]
        %v354 = vld [vmem:[#allocation9 + $0x48] sm:$0xff]
        %v355 = vld [vmem:[#allocation9 + $0x50] sm:$0xff]
        %v356 = vld [vmem:[#allocation9 + $0x58] sm:$0xff]
        %v357 = vld [vmem:[#allocation9 + $0x60] sm:$0xff]
        %v358 = vld [vmem:[#allocation9 + $0x68] sm:$0xff]
        %v359 = vld [vmem:[#allocation9 + $0x70] sm:$0xff]
        %v360 = vld [vmem:[#allocation9 + $0x78] sm:$0xff]
        %v361 = vld [vmem:[#allocation9 + $0x80] sm:$0xff]
        %v362 = vld [vmem:[#allocation9 + $0x88] sm:$0xff]
        %v363 = vld [vmem:[#allocation9 + $0x90] sm:$0xff]
        %v364 = vld [vmem:[#allocation9 + $0x98] sm:$0xff]
        %v365 = vld [vmem:[#allocation9 + $0xa0] sm:$0xff]
        %v366 = vld [vmem:[#allocation9 + $0xa8] sm:$0xff]
        %v367 = vld [vmem:[#allocation9 + $0xb0] sm:$0xff]
        %v368 = vld [vmem:[#allocation9 + $0xb8] sm:$0xff]
        %v369 = vld [vmem:[#allocation9 + $0xc0] sm:$0xff]
        %v370 = vld [vmem:[#allocation9 + $0xc8] sm:$0xff]
        %v371 = vld [vmem:[#allocation9 + $0xd0] sm:$0xff]
        %v372 = vld [vmem:[#allocation9 + $0xd8] sm:$0xff]
        %v373 = vld [vmem:[#allocation9 + $0xe0] sm:$0xff]
        %v374 = vld [vmem:[#allocation9 + $0xe8] sm:$0xff]
        %v375 = vld [vmem:[#allocation9 + $0xf0] sm:$0xff]
        %v376 = vld [vmem:[#allocation9 + $0xf8] sm:$0xff]
        %v377 = vld [vmem:[%s5] sm:$0x3]
        %v379 = vlaneseq
        %v380 = vshrl.u32 %v379, 7
        %v381 = vsub.s32 0, %v380
        %v382 = vrot.slane %v377, %v381
        %v383 = vlaneseq
        %v384 = vshrl.u32 %v383, 7
        %v385 = vsub.s32 1, %v384
        %v386 = vrot.slane %v377, %v385
        %v389 = vld [vmem:[%s319] sm:$0xff]
        %v390 = vld [vmem:[%s1] sm:$0xff]
        %v391 = vld [vmem:[%s3] sm:$0x3]
        %v393 = vlaneseq
        %v394 = vshrl.u32 %v393, 7
        %v395 = vsub.s32 0, %v394
        %v396 = vrot.slane %v391, %v395
        %v397 = vlaneseq
        %v398 = vshrl.u32 %v397, 7
        %v399 = vsub.s32 1, %v398
        %v400 = vrot.slane %v391, %v399
        %v404 = vcombine.high %v390, %v390
        %vm405 = vcmask 31744
        %v407 = vsel %vm405, %v389, 0
        %vm409 = vcmask 1043456
        %v410 = vsel %vm409, %v390, 0
        %v412 = vsel %vm409, %v404, 0
        %414 = vmatprep.subr.mxu0 0.0
        %415 = vmatpush1.msra.mxu0 0.0
        %416 = vmatprep.subr.mxu0 0.0
        %417 = vmatpush1.msra.mxu0 0.0
        %418 = vmatprep.subr.mxu0 0.0
        %419 = vmatpush1.msra.mxu0 0.0
        %420 = vmatprep.subr.mxu0 0.0
        %421 = vmatpush1.msra.mxu0 0.0
        %422 = vmatprep.subr.mxu0 0.0
        %423 = vmatpush1.msra.mxu0 0.0
        %424 = vmatprep.subr.mxu0 0.0
        %425 = vmatpush1.msra.mxu0 0.0
        %426 = vmatprep.subr.mxu0 0.0
        %427 = vmatpush1.msra.mxu0 0.0
        %428 = vmatprep.subr.mxu0 0.0
        %429 = vmatpush1.msra.mxu0 0.0
        %430 = vmatprep.subr.mxu0 0.0
        %431 = vmatpush1.msra.mxu0 0.0
        %432 = vmatprep.subr.mxu0 0.0
        %433 = vmatpush1.msra.mxu0 0.0
        %434 = vmatprep.subr.mxu0 0.0
        %435 = vmatpush1.msra.mxu0 0.0
        %436 = vmatprep.subr.mxu0 0.0
        %437 = vmatpush1.msra.mxu0 0.0
        %438 = vmatprep.subr.mxu0 0.0
        %439 = vmatpush1.msra.mxu0 0.0
        %440 = vmatprep.subr.mxu0 0.0
        %441 = vmatpush1.msra.mxu0 0.0
        %442 = vmatprep.subr.mxu0 0.0
        %443 = vmatpush1.msra.mxu0 0.0
        %444 = vmatprep.subr.mxu0 %v412
        %445 = vmatpush1.msra.mxu0 %v410
        %446 = vmatprep.subr.mxu0 0.0
        %447 = vmatpush2.msra.mxu0 0.0
        %448 = vmatprep.subr.mxu0 0.0
        %449 = vmatpush2.msra.mxu0 0.0
        %450 = vmatprep.subr.mxu0 0.0
        %451 = vmatpush2.msra.mxu0 0.0
        %452 = vmatprep.subr.mxu0 0.0
        %453 = vmatpush2.msra.mxu0 0.0
        %454 = vmatprep.subr.mxu0 0.0
        %455 = vmatpush2.msra.mxu0 0.0
        %456 = vmatprep.subr.mxu0 0.0
        %457 = vmatpush2.msra.mxu0 0.0
        %458 = vmatprep.subr.mxu0 0.0
        %459 = vmatpush2.msra.mxu0 0.0
        %460 = vmatprep.subr.mxu0 0.0
        %461 = vmatpush2.msra.mxu0 0.0
        %462 = vmatprep.subr.mxu0 0.0
        %463 = vmatpush2.msra.mxu0 0.0
        %464 = vmatprep.subr.mxu0 0.0
        %465 = vmatpush2.msra.mxu0 0.0
        %466 = vmatprep.subr.mxu0 0.0
        %467 = vmatpush2.msra.mxu0 0.0
        %468 = vmatprep.subr.mxu0 0.0
        %469 = vmatpush2.msra.mxu0 0.0
        %470 = vmatprep.subr.mxu0 0.0
        %471 = vmatpush2.msra.mxu0 0.0
        %472 = vmatprep.subr.mxu0 0.0
        %473 = vmatpush2.msra.mxu0 0.0
        %474 = vmatprep.subr.mxu0 0.0
        %475 = vmatpush2.msra.mxu0 0.0
        %476 = vmatprep.subr.mxu0 0.0
        %477 = vmatpush2.msra.mxu0 0.0
        %478 = vmatprep.mubr.f32.mxu0 0.0
        %479 = vmatmul.mubr.f32.gmra.mxu0 %v407
        %v480 = vpop.f32.mrf.mxu0
        %v481 = vadd.f32 %v396, %v480
        %v482 = vpop.f32.mrf.mxu0
        %v483 = vadd.f32 %v400, %v482
        %484 = vdwg.mxu0
        %v485 = vld [vmem:[#allocation2] sm:$0x3]
        %v486 = vld [vmem:[#allocation3] sm:$0x3]
        %v487 = vld [vmem:[#allocation4] sm:$0x3]
        %v488 = vld [vmem:[#allocation5] sm:$0x3]
        %vm489 = vcmask 523264
        %v491 = vsel %vm489, %v485, 0
        %493 = vmatprep.subr.mxu0 0.0
        %494 = vmatpush1.msra.mxu0 0.0
        %495 = vmatprep.subr.mxu0 0.0
        %496 = vmatpush1.msra.mxu0 0.0
        %497 = vmatprep.subr.mxu0 0.0
        %498 = vmatpush1.msra.mxu0 0.0
        %499 = vmatprep.subr.mxu0 0.0
        %500 = vmatpush1.msra.mxu0 0.0
        %501 = vmatprep.subr.mxu0 0.0
        %502 = vmatpush1.msra.mxu0 0.0
        %503 = vmatprep.subr.mxu0 0.0
        %504 = vmatpush1.msra.mxu0 0.0
        %505 = vmatprep.subr.mxu0 0.0
        %506 = vmatpush1.msra.mxu0 0.0
        %507 = vmatprep.subr.mxu0 0.0
        %508 = vmatpush1.msra.mxu0 0.0
        %509 = vmatprep.subr.mxu0 %v344
        %510 = vmatpush1.msra.mxu0 %v343
        %511 = vmatprep.subr.mxu0 %v342
        %512 = vmatpush1.msra.mxu0 %v341
        %513 = vmatprep.subr.mxu0 %v340
        %514 = vmatpush1.msra.mxu0 %v339
        %515 = vmatprep.subr.mxu0 %v338
        %516 = vmatpush1.msra.mxu0 %v337
        %517 = vmatprep.subr.mxu0 %v336
        %518 = vmatpush1.msra.mxu0 %v335
        %519 = vmatprep.subr.mxu0 %v334
        %520 = vmatpush1.msra.mxu0 %v333
        %521 = vmatprep.subr.mxu0 %v332
        %522 = vmatpush1.msra.mxu0 %v331
        %523 = vmatprep.subr.mxu0 %v330
        %524 = vmatpush1.msra.mxu0 %v329
        %525 = vmatprep.subr.mxu0 0.0
        %526 = vmatpush2.msra.mxu0 0.0
        %527 = vmatprep.subr.mxu0 0.0
        %528 = vmatpush2.msra.mxu0 0.0
        %529 = vmatprep.subr.mxu0 0.0
        %530 = vmatpush2.msra.mxu0 0.0
        %531 = vmatprep.subr.mxu0 0.0
        %532 = vmatpush2.msra.mxu0 0.0
        %533 = vmatprep.subr.mxu0 0.0
        %534 = vmatpush2.msra.mxu0 0.0
        %535 = vmatprep.subr.mxu0 0.0
        %536 = vmatpush2.msra.mxu0 0.0
        %537 = vmatprep.subr.mxu0 0.0
        %538 = vmatpush2.msra.mxu0 0.0
        %539 = vmatprep.subr.mxu0 0.0
        %540 = vmatpush2.msra.mxu0 0.0
        %541 = vmatprep.subr.mxu0 0.0
        %542 = vmatpush2.msra.mxu0 0.0
        %543 = vmatprep.subr.mxu0 0.0
        %544 = vmatpush2.msra.mxu0 0.0
        %545 = vmatprep.subr.mxu0 0.0
        %546 = vmatpush2.msra.mxu0 0.0
        %547 = vmatprep.subr.mxu0 0.0
        %548 = vmatpush2.msra.mxu0 0.0
        %549 = vmatprep.subr.mxu0 0.0
        %550 = vmatpush2.msra.mxu0 0.0
        %551 = vmatprep.subr.mxu0 0.0
        %552 = vmatpush2.msra.mxu0 0.0
        %553 = vmatprep.subr.mxu0 0.0
        %554 = vmatpush2.msra.mxu0 0.0
        %555 = vmatprep.subr.mxu0 0.0
        %556 = vmatpush2.msra.mxu0 0.0
        %557 = vmatprep.mubr.f32.mxu0 0.0
        %558 = vmatmul.mubr.f32.gmra.mxu0 %v491
        %v559 = vpop.f32.mrf.mxu0
        %v560 = vadd.f32 0.0, %v559
        %v561 = vpop.f32.mrf.mxu0
        %v562 = vadd.f32 0.0, %v561
        %563 = vdwg.mxu0
        %v564 = vadd.f32 %v481, %v560
        %v565 = vadd.f32 %v483, %v562
        %v566 = vxor.u32 %v564, 2147483648
        %v567 = vxor.u32 %v565, 2147483648
        %v568 = vmul.f32 %v566, 1.442695
        %v569 = vpow.pop %v568
        %v570 = vmul.f32 %v567, 1.442695
        %v571 = vpow.pop %v570
        %v572 = vadd.f32 %v569, 1.0
        %v573 = vadd.f32 %v571, 1.0
        %v574 = vrcp.pop %v572
        %v575 = vmul.f32 1.0, %v574
        %v576 = vrcp.pop %v573
        %v577 = vmul.f32 1.0, %v576
        %v578 = vtanh.pop %v565
        %580 = vrot.lane.b32.xlu0 %v486, 64
        %v581 = vpop.permute.xlu0 %580
        %v583 = vmul.f32 %v575, %v581
        %585 = vrot.lane.b32.xlu0 %v578, 64
        %v586 = vpop.permute.xlu0 %585
        %v588 = vmul.f32 %v575, %v586
        %590 = vrot.lane.b32.xlu0 %v588, 64
        %v591 = vpop.permute.xlu0 %590
        %v593 = vadd.f32 %v583, %v591
        %v594 = vtanh.pop %v593
        %596 = vrot.lane.b32.xlu0 %v594, 64
        %v597 = vpop.permute.xlu0 %596
        %v599 = vmul.f32 %v577, %v597
        %601 = vrot.lane.b32.xlu0 %v487, 64
        %v602 = vpop.permute.xlu0 %601
        %v604 = vsel %vm489, %v599, %v602
        %605 = vmatprep.subr.mxu0 %v376
        %606 = vmatpush1.msra.mxu0 %v375
        %607 = vmatprep.subr.mxu0 %v374
        %608 = vmatpush1.msra.mxu0 %v373
        %609 = vmatprep.subr.mxu0 %v372
        %610 = vmatpush1.msra.mxu0 %v371
        %611 = vmatprep.subr.mxu0 %v370
        %612 = vmatpush1.msra.mxu0 %v369
        %613 = vmatprep.subr.mxu0 %v368
        %614 = vmatpush1.msra.mxu0 %v367
        %615 = vmatprep.subr.mxu0 %v366
        %616 = vmatpush1.msra.mxu0 %v365
        %617 = vmatprep.subr.mxu0 %v364
        %618 = vmatpush1.msra.mxu0 %v363
        %619 = vmatprep.subr.mxu0 %v362
        %620 = vmatpush1.msra.mxu0 %v361
        %621 = vmatprep.subr.mxu0 %v360
        %622 = vmatpush1.msra.mxu0 %v359
        %623 = vmatprep.subr.mxu0 %v358
        %624 = vmatpush1.msra.mxu0 %v357
        %625 = vmatprep.subr.mxu0 %v356
        %626 = vmatpush1.msra.mxu0 %v355
        %627 = vmatprep.subr.mxu0 %v354
        %628 = vmatpush1.msra.mxu0 %v353
        %629 = vmatprep.subr.mxu0 %v352
        %630 = vmatpush1.msra.mxu0 %v351
        %631 = vmatprep.subr.mxu0 %v350
        %632 = vmatpush1.msra.mxu0 %v349
        %633 = vmatprep.subr.mxu0 %v348
        %634 = vmatpush1.msra.mxu0 %v347
        %635 = vmatprep.subr.mxu0 %v346
        %636 = vmatpush1.msra.mxu0 %v345
        %637 = vmatprep.subr.mxu0 0.0
        %638 = vmatpush2.msra.mxu0 0.0
        %639 = vmatprep.subr.mxu0 0.0
        %640 = vmatpush2.msra.mxu0 0.0
        %641 = vmatprep.subr.mxu0 0.0
        %642 = vmatpush2.msra.mxu0 0.0
        %643 = vmatprep.subr.mxu0 0.0
        %644 = vmatpush2.msra.mxu0 0.0
        %645 = vmatprep.subr.mxu0 0.0
        %646 = vmatpush2.msra.mxu0 0.0
        %647 = vmatprep.subr.mxu0 0.0
        %648 = vmatpush2.msra.mxu0 0.0
        %649 = vmatprep.subr.mxu0 0.0
        %650 = vmatpush2.msra.mxu0 0.0
        %651 = vmatprep.subr.mxu0 0.0
        %652 = vmatpush2.msra.mxu0 0.0
        %653 = vmatprep.subr.mxu0 0.0
        %654 = vmatpush2.msra.mxu0 0.0
        %655 = vmatprep.subr.mxu0 0.0
        %656 = vmatpush2.msra.mxu0 0.0
        %657 = vmatprep.subr.mxu0 0.0
        %658 = vmatpush2.msra.mxu0 0.0
        %659 = vmatprep.subr.mxu0 0.0
        %660 = vmatpush2.msra.mxu0 0.0
        %661 = vmatprep.subr.mxu0 0.0
        %662 = vmatpush2.msra.mxu0 0.0
        %663 = vmatprep.subr.mxu0 0.0
        %664 = vmatpush2.msra.mxu0 0.0
        %665 = vmatprep.subr.mxu0 0.0
        %666 = vmatpush2.msra.mxu0 0.0
        %667 = vmatprep.subr.mxu0 0.0
        %668 = vmatpush2.msra.mxu0 0.0
        %669 = vmatprep.mubr.f32.mxu0 0.0
        %670 = vmatmul.mubr.f32.gmra.mxu0 %v604
        %v671 = vpop.f32.mrf.mxu0
        %v672 = vadd.f32 %v382, %v671
        %v673 = vpop.f32.mrf.mxu0
        %v674 = vadd.f32 %v386, %v673
        %675 = vdwg.mxu0
        %v676 = vxor.u32 %v672, 2147483648
        %v677 = vxor.u32 %v674, 2147483648
        %v678 = vmul.f32 %v676, 1.442695
        %v679 = vpow.pop %v678
        %v680 = vmul.f32 %v677, 1.442695
        %v681 = vpow.pop %v680
        %v682 = vadd.f32 %v679, 1.0
        %v683 = vadd.f32 %v681, 1.0
        %v684 = vrcp.pop %v682
        %v685 = vmul.f32 1.0, %v684
        %v686 = vrcp.pop %v683
        %v687 = vmul.f32 1.0, %v686
        %v688 = vtanh.pop %v674
        %690 = vrot.lane.b32.xlu0 %v488, 64
        %v691 = vpop.permute.xlu0 %690
        %v693 = vmul.f32 %v685, %v691
        %695 = vrot.lane.b32.xlu0 %v688, 64
        %v696 = vpop.permute.xlu0 %695
        %v698 = vmul.f32 %v685, %v696
        %700 = vrot.lane.b32.xlu0 %v698, 64
        %v701 = vpop.permute.xlu0 %700
        %v703 = vadd.f32 %v693, %v701
        %v704 = vtanh.pop %v703
        %706 = vrot.lane.b32.xlu0 %v704, 64
        %v707 = vpop.permute.xlu0 %706
        %v709 = vmul.f32 %v687, %v707
        %v711 = vsel %vm489, %v599, 0
        %713 = vmatprep.subr.mxu0 0.0
        %714 = vmatpush1.msra.mxu0 0.0
        %715 = vmatprep.subr.mxu0 0.0
        %716 = vmatpush1.msra.mxu0 0.0
        %717 = vmatprep.subr.mxu0 0.0
        %718 = vmatpush1.msra.mxu0 0.0
        %719 = vmatprep.subr.mxu0 0.0
        %720 = vmatpush1.msra.mxu0 0.0
        %721 = vmatprep.subr.mxu0 0.0
        %722 = vmatpush1.msra.mxu0 0.0
        %723 = vmatprep.subr.mxu0 0.0
        %724 = vmatpush1.msra.mxu0 0.0
        %725 = vmatprep.subr.mxu0 0.0
        %726 = vmatpush1.msra.mxu0 0.0
        %727 = vmatprep.subr.mxu0 0.0
        %728 = vmatpush1.msra.mxu0 0.0
        %729 = vmatprep.subr.mxu0 %v344
        %730 = vmatpush1.msra.mxu0 %v343
        %731 = vmatprep.subr.mxu0 %v342
        %732 = vmatpush1.msra.mxu0 %v341
        %733 = vmatprep.subr.mxu0 %v340
        %734 = vmatpush1.msra.mxu0 %v339
        %735 = vmatprep.subr.mxu0 %v338
        %736 = vmatpush1.msra.mxu0 %v337
        %737 = vmatprep.subr.mxu0 %v336
        %738 = vmatpush1.msra.mxu0 %v335
        %739 = vmatprep.subr.mxu0 %v334
        %740 = vmatpush1.msra.mxu0 %v333
        %741 = vmatprep.subr.mxu0 %v332
        %742 = vmatpush1.msra.mxu0 %v331
        %743 = vmatprep.subr.mxu0 %v330
        %744 = vmatpush1.msra.mxu0 %v329
        %745 = vmatprep.subr.mxu0 0.0
        %746 = vmatpush2.msra.mxu0 0.0
        %747 = vmatprep.subr.mxu0 0.0
        %748 = vmatpush2.msra.mxu0 0.0
        %749 = vmatprep.subr.mxu0 0.0
        %750 = vmatpush2.msra.mxu0 0.0
        %751 = vmatprep.subr.mxu0 0.0
        %752 = vmatpush2.msra.mxu0 0.0
        %753 = vmatprep.subr.mxu0 0.0
        %754 = vmatpush2.msra.mxu0 0.0
        %755 = vmatprep.subr.mxu0 0.0
        %756 = vmatpush2.msra.mxu0 0.0
        %757 = vmatprep.subr.mxu0 0.0
        %758 = vmatpush2.msra.mxu0 0.0
        %759 = vmatprep.subr.mxu0 0.0
        %760 = vmatpush2.msra.mxu0 0.0
        %761 = vmatprep.subr.mxu0 0.0
        %762 = vmatpush2.msra.mxu0 0.0
        %763 = vmatprep.subr.mxu0 0.0
        %764 = vmatpush2.msra.mxu0 0.0
        %765 = vmatprep.subr.mxu0 0.0
        %766 = vmatpush2.msra.mxu0 0.0
        %767 = vmatprep.subr.mxu0 0.0
        %768 = vmatpush2.msra.mxu0 0.0
        %769 = vmatprep.subr.mxu0 0.0
        %770 = vmatpush2.msra.mxu0 0.0
        %771 = vmatprep.subr.mxu0 0.0
        %772 = vmatpush2.msra.mxu0 0.0
        %773 = vmatprep.subr.mxu0 0.0
        %774 = vmatpush2.msra.mxu0 0.0
        %775 = vmatprep.subr.mxu0 0.0
        %776 = vmatpush2.msra.mxu0 0.0
        %777 = vmatprep.mubr.f32.mxu0 0.0
        %778 = vmatmul.mubr.f32.gmra.mxu0 %v711
        %v779 = vpop.f32.mrf.mxu0
        %v780 = vadd.f32 0.0, %v779
        %v781 = vpop.f32.mrf.mxu0
        %v782 = vadd.f32 0.0, %v781
        %783 = vdwg.mxu0
        %v786 = vrot.slane %v780, 6
        %v787 = vrot.slane %v782, 6
        %v790 = vadd.f32 %v481, %v786
        %v791 = vadd.f32 %v483, %v787
        %v792 = vxor.u32 %v790, 2147483648
        %v793 = vxor.u32 %v791, 2147483648
        %v794 = vmul.f32 %v792, 1.442695
        %v795 = vpow.pop %v794
        %v796 = vmul.f32 %v793, 1.442695
        %v797 = vpow.pop %v796
        %v798 = vadd.f32 %v795, 1.0
        %v799 = vadd.f32 %v797, 1.0
        %v800 = vrcp.pop %v798
        %v801 = vmul.f32 1.0, %v800
        %v802 = vrcp.pop %v799
        %v803 = vmul.f32 1.0, %v802
        %v804 = vtanh.pop %v791
        %v806 = vrot.slane %v593, 6
        %v808 = vmul.f32 %v801, %v806
        %810 = vrot.lane.b32.xlu0 %v804, 64
        %v811 = vpop.permute.xlu0 %810
        %v813 = vmul.f32 %v801, %v811
        %815 = vrot.lane.b32.xlu0 %v813, 64
        %v816 = vpop.permute.xlu0 %815
        %v818 = vadd.f32 %v808, %v816
        %v819 = vtanh.pop %v818
        %821 = vrot.lane.b32.xlu0 %v819, 64
        %v822 = vpop.permute.xlu0 %821
        %v824 = vmul.f32 %v803, %v822
        %v826 = vrot.slane %v709, 6
        %827 = vrot.lane.b32.xlu0 %v826, 64
        %v828 = vpop.permute.xlu0 %827
        %v830 = vsel %vm489, %v824, %v828
        %v832 = vrot.slane %v830, 2
        %834 = vmatprep.subr.mxu0 %v376
        %835 = vmatpush1.msra.mxu0 %v375
        %836 = vmatprep.subr.mxu0 %v374
        %837 = vmatpush1.msra.mxu0 %v373
        %838 = vmatprep.subr.mxu0 %v372
        %839 = vmatpush1.msra.mxu0 %v371
        %840 = vmatprep.subr.mxu0 %v370
        %841 = vmatpush1.msra.mxu0 %v369
        %842 = vmatprep.subr.mxu0 %v368
        %843 = vmatpush1.msra.mxu0 %v367
        %844 = vmatprep.subr.mxu0 %v366
        %845 = vmatpush1.msra.mxu0 %v365
        %846 = vmatprep.subr.mxu0 %v364
        %847 = vmatpush1.msra.mxu0 %v363
        %848 = vmatprep.subr.mxu0 %v362
        %849 = vmatpush1.msra.mxu0 %v361
        %850 = vmatprep.subr.mxu0 %v360
        %851 = vmatpush1.msra.mxu0 %v359
        %852 = vmatprep.subr.mxu0 %v358
        %853 = vmatpush1.msra.mxu0 %v357
        %854 = vmatprep.subr.mxu0 %v356
        %855 = vmatpush1.msra.mxu0 %v355
        %856 = vmatprep.subr.mxu0 %v354
        %857 = vmatpush1.msra.mxu0 %v353
        %858 = vmatprep.subr.mxu0 %v352
        %859 = vmatpush1.msra.mxu0 %v351
        %860 = vmatprep.subr.mxu0 %v350
        %861 = vmatpush1.msra.mxu0 %v349
        %862 = vmatprep.subr.mxu0 %v348
        %863 = vmatpush1.msra.mxu0 %v347
        %864 = vmatprep.subr.mxu0 %v346
        %865 = vmatpush1.msra.mxu0 %v345
        %866 = vmatprep.subr.mxu0 0.0
        %867 = vmatpush2.msra.mxu0 0.0
        %868 = vmatprep.subr.mxu0 0.0
        %869 = vmatpush2.msra.mxu0 0.0
        %870 = vmatprep.subr.mxu0 0.0
        %871 = vmatpush2.msra.mxu0 0.0
        %872 = vmatprep.subr.mxu0 0.0
        %873 = vmatpush2.msra.mxu0 0.0
        %874 = vmatprep.subr.mxu0 0.0
        %875 = vmatpush2.msra.mxu0 0.0
        %876 = vmatprep.subr.mxu0 0.0
        %877 = vmatpush2.msra.mxu0 0.0
        %878 = vmatprep.subr.mxu0 0.0
        %879 = vmatpush2.msra.mxu0 0.0
        %880 = vmatprep.subr.mxu0 0.0
        %881 = vmatpush2.msra.mxu0 0.0
        %882 = vmatprep.subr.mxu0 0.0
        %883 = vmatpush2.msra.mxu0 0.0
        %884 = vmatprep.subr.mxu0 0.0
        %885 = vmatpush2.msra.mxu0 0.0
        %886 = vmatprep.subr.mxu0 0.0
        %887 = vmatpush2.msra.mxu0 0.0
        %888 = vmatprep.subr.mxu0 0.0
        %889 = vmatpush2.msra.mxu0 0.0
        %890 = vmatprep.subr.mxu0 0.0
        %891 = vmatpush2.msra.mxu0 0.0
        %892 = vmatprep.subr.mxu0 0.0
        %893 = vmatpush2.msra.mxu0 0.0
        %894 = vmatprep.subr.mxu0 0.0
        %895 = vmatpush2.msra.mxu0 0.0
        %896 = vmatprep.subr.mxu0 0.0
        %897 = vmatpush2.msra.mxu0 0.0
        %898 = vmatprep.mubr.f32.mxu0 0.0
        %899 = vmatmul.mubr.f32.gmra.mxu0 %v832
        %v900 = vpop.f32.mrf.mxu0
        %v901 = vadd.f32 %v382, %v900
        %v902 = vpop.f32.mrf.mxu0
        %v903 = vadd.f32 %v386, %v902
        %904 = vdwg.mxu0
        %v905 = vxor.u32 %v901, 2147483648
        %v906 = vxor.u32 %v903, 2147483648
        %v907 = vmul.f32 %v905, 1.442695
        %v908 = vpow.pop %v907
        %v909 = vmul.f32 %v906, 1.442695
        %v910 = vpow.pop %v909
        %v911 = vadd.f32 %v908, 1.0
        %v912 = vadd.f32 %v910, 1.0
        %v913 = vrcp.pop %v911
        %v914 = vmul.f32 1.0, %v913
        %v915 = vrcp.pop %v912
        %v916 = vmul.f32 1.0, %v915
        %v917 = vtanh.pop %v903
        %v918 = vmul.f32 %v914, %v703
        %920 = vrot.lane.b32.xlu0 %v917, 64
        %v921 = vpop.permute.xlu0 %920
        %v923 = vmul.f32 %v914, %v921
        %925 = vrot.lane.b32.xlu0 %v923, 64
        %v926 = vpop.permute.xlu0 %925
        %v928 = vadd.f32 %v918, %v926
        %v929 = vtanh.pop %v928
        %931 = vrot.lane.b32.xlu0 %v929, 64
        %v932 = vpop.permute.xlu0 %931
        %v934 = vmul.f32 %v916, %v932
        %v936 = vrot.slane %v824, 2
        %v937 = vsel %vm489, %v936, 0
        %939 = vmatprep.subr.mxu0 0.0
        %940 = vmatpush1.msra.mxu0 0.0
        %941 = vmatprep.subr.mxu0 0.0
        %942 = vmatpush1.msra.mxu0 0.0
        %943 = vmatprep.subr.mxu0 0.0
        %944 = vmatpush1.msra.mxu0 0.0
        %945 = vmatprep.subr.mxu0 0.0
        %946 = vmatpush1.msra.mxu0 0.0
        %947 = vmatprep.subr.mxu0 0.0
        %948 = vmatpush1.msra.mxu0 0.0
        %949 = vmatprep.subr.mxu0 0.0
        %950 = vmatpush1.msra.mxu0 0.0
        %951 = vmatprep.subr.mxu0 0.0
        %952 = vmatpush1.msra.mxu0 0.0
        %953 = vmatprep.subr.mxu0 0.0
        %954 = vmatpush1.msra.mxu0 0.0
        %955 = vmatprep.subr.mxu0 %v344
        %956 = vmatpush1.msra.mxu0 %v343
        %957 = vmatprep.subr.mxu0 %v342
        %958 = vmatpush1.msra.mxu0 %v341
        %959 = vmatprep.subr.mxu0 %v340
        %960 = vmatpush1.msra.mxu0 %v339
        %961 = vmatprep.subr.mxu0 %v338
        %962 = vmatpush1.msra.mxu0 %v337
        %963 = vmatprep.subr.mxu0 %v336
        %964 = vmatpush1.msra.mxu0 %v335
        %965 = vmatprep.subr.mxu0 %v334
        %966 = vmatpush1.msra.mxu0 %v333
        %967 = vmatprep.subr.mxu0 %v332
        %968 = vmatpush1.msra.mxu0 %v331
        %969 = vmatprep.subr.mxu0 %v330
        %970 = vmatpush1.msra.mxu0 %v329
        %971 = vmatprep.subr.mxu0 0.0
        %972 = vmatpush2.msra.mxu0 0.0
        %973 = vmatprep.subr.mxu0 0.0
        %974 = vmatpush2.msra.mxu0 0.0
        %975 = vmatprep.subr.mxu0 0.0
        %976 = vmatpush2.msra.mxu0 0.0
        %977 = vmatprep.subr.mxu0 0.0
        %978 = vmatpush2.msra.mxu0 0.0
        %979 = vmatprep.subr.mxu0 0.0
        %980 = vmatpush2.msra.mxu0 0.0
        %981 = vmatprep.subr.mxu0 0.0
        %982 = vmatpush2.msra.mxu0 0.0
        %983 = vmatprep.subr.mxu0 0.0
        %984 = vmatpush2.msra.mxu0 0.0
        %985 = vmatprep.subr.mxu0 0.0
        %986 = vmatpush2.msra.mxu0 0.0
        %987 = vmatprep.subr.mxu0 0.0
        %988 = vmatpush2.msra.mxu0 0.0
        %989 = vmatprep.subr.mxu0 0.0
        %990 = vmatpush2.msra.mxu0 0.0
        %991 = vmatprep.subr.mxu0 0.0
        %992 = vmatpush2.msra.mxu0 0.0
        %993 = vmatprep.subr.mxu0 0.0
        %994 = vmatpush2.msra.mxu0 0.0
        %995 = vmatprep.subr.mxu0 0.0
        %996 = vmatpush2.msra.mxu0 0.0
        %997 = vmatprep.subr.mxu0 0.0
        %998 = vmatpush2.msra.mxu0 0.0
        %999 = vmatprep.subr.mxu0 0.0
        %1000 = vmatpush2.msra.mxu0 0.0
        %1001 = vmatprep.subr.mxu0 0.0
        %1002 = vmatpush2.msra.mxu0 0.0
        %1003 = vmatprep.mubr.f32.mxu0 0.0
        %1004 = vmatmul.mubr.f32.gmra.mxu0 %v937
        %v1005 = vpop.f32.mrf.mxu0
        %v1006 = vadd.f32 0.0, %v1005
        %v1007 = vpop.f32.mrf.mxu0
        %v1008 = vadd.f32 0.0, %v1007
        %1009 = vdwg.mxu0
        %v1012 = vrot.slane %v1006, 4
        %v1013 = vrot.slane %v1008, 4
        %v1016 = vadd.f32 %v481, %v1012
        %v1017 = vadd.f32 %v483, %v1013
        %v1018 = vxor.u32 %v1016, 2147483648
        %v1019 = vxor.u32 %v1017, 2147483648
        %v1020 = vmul.f32 %v1018, 1.442695
        %v1021 = vpow.pop %v1020
        %v1022 = vmul.f32 %v1019, 1.442695
        %v1023 = vpow.pop %v1022
        %v1024 = vadd.f32 %v1021, 1.0
        %v1025 = vadd.f32 %v1023, 1.0
        %v1026 = vrcp.pop %v1024
        %v1027 = vmul.f32 1.0, %v1026
        %v1028 = vrcp.pop %v1025
        %v1029 = vmul.f32 1.0, %v1028
        %v1030 = vtanh.pop %v1017
        %v1032 = vrot.slane %v818, 6
        %v1034 = vmul.f32 %v1027, %v1032
        %1036 = vrot.lane.b32.xlu0 %v1030, 64
        %v1037 = vpop.permute.xlu0 %1036
        %v1039 = vmul.f32 %v1027, %v1037
        %1041 = vrot.lane.b32.xlu0 %v1039, 64
        %v1042 = vpop.permute.xlu0 %1041
        %v1044 = vadd.f32 %v1034, %v1042
        %v1045 = vtanh.pop %v1044
        %1047 = vrot.lane.b32.xlu0 %v1045, 64
        %v1048 = vpop.permute.xlu0 %1047
        %v1050 = vmul.f32 %v1029, %v1048
        %v1052 = vrot.slane %v934, 4
        %1053 = vrot.lane.b32.xlu0 %v1052, 64
        %v1054 = vpop.permute.xlu0 %1053
        %v1056 = vsel %vm489, %v1050, %v1054
        %v1058 = vrot.slane %v1056, 4
        %1060 = vmatprep.subr.mxu0 %v376
        %1061 = vmatpush1.msra.mxu0 %v375
        %1062 = vmatprep.subr.mxu0 %v374
        %1063 = vmatpush1.msra.mxu0 %v373
        %1064 = vmatprep.subr.mxu0 %v372
        %1065 = vmatpush1.msra.mxu0 %v371
        %1066 = vmatprep.subr.mxu0 %v370
        %1067 = vmatpush1.msra.mxu0 %v369
        %1068 = vmatprep.subr.mxu0 %v368
        %1069 = vmatpush1.msra.mxu0 %v367
        %1070 = vmatprep.subr.mxu0 %v366
        %1071 = vmatpush1.msra.mxu0 %v365
        %1072 = vmatprep.subr.mxu0 %v364
        %1073 = vmatpush1.msra.mxu0 %v363
        %1074 = vmatprep.subr.mxu0 %v362
        %1075 = vmatpush1.msra.mxu0 %v361
        %1076 = vmatprep.subr.mxu0 %v360
        %1077 = vmatpush1.msra.mxu0 %v359
        %1078 = vmatprep.subr.mxu0 %v358
        %1079 = vmatpush1.msra.mxu0 %v357
        %1080 = vmatprep.subr.mxu0 %v356
        %1081 = vmatpush1.msra.mxu0 %v355
        %1082 = vmatprep.subr.mxu0 %v354
        %1083 = vmatpush1.msra.mxu0 %v353
        %1084 = vmatprep.subr.mxu0 %v352
        %1085 = vmatpush1.msra.mxu0 %v351
        %1086 = vmatprep.subr.mxu0 %v350
        %1087 = vmatpush1.msra.mxu0 %v349
        %1088 = vmatprep.subr.mxu0 %v348
        %1089 = vmatpush1.msra.mxu0 %v347
        %1090 = vmatprep.subr.mxu0 %v346
        %1091 = vmatpush1.msra.mxu0 %v345
        %1092 = vmatprep.subr.mxu0 0.0
        %1093 = vmatpush2.msra.mxu0 0.0
        %1094 = vmatprep.subr.mxu0 0.0
        %1095 = vmatpush2.msra.mxu0 0.0
        %1096 = vmatprep.subr.mxu0 0.0
        %1097 = vmatpush2.msra.mxu0 0.0
        %1098 = vmatprep.subr.mxu0 0.0
        %1099 = vmatpush2.msra.mxu0 0.0
        %1100 = vmatprep.subr.mxu0 0.0
        %1101 = vmatpush2.msra.mxu0 0.0
        %1102 = vmatprep.subr.mxu0 0.0
        %1103 = vmatpush2.msra.mxu0 0.0
        %1104 = vmatprep.subr.mxu0 0.0
        %1105 = vmatpush2.msra.mxu0 0.0
        %1106 = vmatprep.subr.mxu0 0.0
        %1107 = vmatpush2.msra.mxu0 0.0
        %1108 = vmatprep.subr.mxu0 0.0
        %1109 = vmatpush2.msra.mxu0 0.0
        %1110 = vmatprep.subr.mxu0 0.0
        %1111 = vmatpush2.msra.mxu0 0.0
        %1112 = vmatprep.subr.mxu0 0.0
        %1113 = vmatpush2.msra.mxu0 0.0
        %1114 = vmatprep.subr.mxu0 0.0
        %1115 = vmatpush2.msra.mxu0 0.0
        %1116 = vmatprep.subr.mxu0 0.0
        %1117 = vmatpush2.msra.mxu0 0.0
        %1118 = vmatprep.subr.mxu0 0.0
        %1119 = vmatpush2.msra.mxu0 0.0
        %1120 = vmatprep.subr.mxu0 0.0
        %1121 = vmatpush2.msra.mxu0 0.0
        %1122 = vmatprep.subr.mxu0 0.0
        %1123 = vmatpush2.msra.mxu0 0.0
        %1124 = vmatprep.mubr.f32.mxu0 0.0
        %1125 = vmatmul.mubr.f32.gmra.mxu0 %v1058
        %v1126 = vpop.f32.mrf.mxu0
        %v1127 = vadd.f32 %v382, %v1126
        %v1128 = vpop.f32.mrf.mxu0
        %v1129 = vadd.f32 %v386, %v1128
        %1130 = vdwg.mxu0
        %v1131 = vxor.u32 %v1127, 2147483648
        %v1132 = vxor.u32 %v1129, 2147483648
        %v1133 = vmul.f32 %v1131, 1.442695
        %v1134 = vpow.pop %v1133
        %v1135 = vmul.f32 %v1132, 1.442695
        %v1136 = vpow.pop %v1135
        %v1137 = vadd.f32 %v1134, 1.0
        %v1138 = vadd.f32 %v1136, 1.0
        %v1139 = vrcp.pop %v1137
        %v1140 = vmul.f32 1.0, %v1139
        %v1141 = vrcp.pop %v1138
        %v1142 = vmul.f32 1.0, %v1141
        %v1143 = vtanh.pop %v1129
        %v1144 = vmul.f32 %v1140, %v928
        %1146 = vrot.lane.b32.xlu0 %v1143, 64
        %v1147 = vpop.permute.xlu0 %1146
        %v1149 = vmul.f32 %v1140, %v1147
        %1151 = vrot.lane.b32.xlu0 %v1149, 64
        %v1152 = vpop.permute.xlu0 %1151
        %v1154 = vadd.f32 %v1144, %v1152
        %v1155 = vtanh.pop %v1154
        %1157 = vrot.lane.b32.xlu0 %v1155, 64
        %v1158 = vpop.permute.xlu0 %1157
        %v1160 = vmul.f32 %v1142, %v1158
        %v1162 = vrot.slane %v1050, 4
        %v1163 = vsel %vm489, %v1162, 0
        %1165 = vmatprep.subr.mxu0 0.0
        %1166 = vmatpush1.msra.mxu0 0.0
        %1167 = vmatprep.subr.mxu0 0.0
        %1168 = vmatpush1.msra.mxu0 0.0
        %1169 = vmatprep.subr.mxu0 0.0
        %1170 = vmatpush1.msra.mxu0 0.0
        %1171 = vmatprep.subr.mxu0 0.0
        %1172 = vmatpush1.msra.mxu0 0.0
        %1173 = vmatprep.subr.mxu0 0.0
        %1174 = vmatpush1.msra.mxu0 0.0
        %1175 = vmatprep.subr.mxu0 0.0
        %1176 = vmatpush1.msra.mxu0 0.0
        %1177 = vmatprep.subr.mxu0 0.0
        %1178 = vmatpush1.msra.mxu0 0.0
        %1179 = vmatprep.subr.mxu0 0.0
        %1180 = vmatpush1.msra.mxu0 0.0
        %1181 = vmatprep.subr.mxu0 %v344
        %1182 = vmatpush1.msra.mxu0 %v343
        %1183 = vmatprep.subr.mxu0 %v342
        %1184 = vmatpush1.msra.mxu0 %v341
        %1185 = vmatprep.subr.mxu0 %v340
        %1186 = vmatpush1.msra.mxu0 %v339
        %1187 = vmatprep.subr.mxu0 %v338
        %1188 = vmatpush1.msra.mxu0 %v337
        %1189 = vmatprep.subr.mxu0 %v336
        %1190 = vmatpush1.msra.mxu0 %v335
        %1191 = vmatprep.subr.mxu0 %v334
        %1192 = vmatpush1.msra.mxu0 %v333
        %1193 = vmatprep.subr.mxu0 %v332
        %1194 = vmatpush1.msra.mxu0 %v331
        %1195 = vmatprep.subr.mxu0 %v330
        %1196 = vmatpush1.msra.mxu0 %v329
        %1197 = vmatprep.subr.mxu0 0.0
        %1198 = vmatpush2.msra.mxu0 0.0
        %1199 = vmatprep.subr.mxu0 0.0
        %1200 = vmatpush2.msra.mxu0 0.0
        %1201 = vmatprep.subr.mxu0 0.0
        %1202 = vmatpush2.msra.mxu0 0.0
        %1203 = vmatprep.subr.mxu0 0.0
        %1204 = vmatpush2.msra.mxu0 0.0
        %1205 = vmatprep.subr.mxu0 0.0
        %1206 = vmatpush2.msra.mxu0 0.0
        %1207 = vmatprep.subr.mxu0 0.0
        %1208 = vmatpush2.msra.mxu0 0.0
        %1209 = vmatprep.subr.mxu0 0.0
        %1210 = vmatpush2.msra.mxu0 0.0
        %1211 = vmatprep.subr.mxu0 0.0
        %1212 = vmatpush2.msra.mxu0 0.0
        %1213 = vmatprep.subr.mxu0 0.0
        %1214 = vmatpush2.msra.mxu0 0.0
        %1215 = vmatprep.subr.mxu0 0.0
        %1216 = vmatpush2.msra.mxu0 0.0
        %1217 = vmatprep.subr.mxu0 0.0
        %1218 = vmatpush2.msra.mxu0 0.0
        %1219 = vmatprep.subr.mxu0 0.0
        %1220 = vmatpush2.msra.mxu0 0.0
        %1221 = vmatprep.subr.mxu0 0.0
        %1222 = vmatpush2.msra.mxu0 0.0
        %1223 = vmatprep.subr.mxu0 0.0
        %1224 = vmatpush2.msra.mxu0 0.0
        %1225 = vmatprep.subr.mxu0 0.0
        %1226 = vmatpush2.msra.mxu0 0.0
        %1227 = vmatprep.subr.mxu0 0.0
        %1228 = vmatpush2.msra.mxu0 0.0
        %1229 = vmatprep.mubr.f32.mxu0 0.0
        %1230 = vmatmul.mubr.f32.gmra.mxu0 %v1163
        %v1231 = vpop.f32.mrf.mxu0
        %v1232 = vadd.f32 0.0, %v1231
        %v1233 = vpop.f32.mrf.mxu0
        %v1234 = vadd.f32 0.0, %v1233
        %1235 = vdwg.mxu0
        %v1238 = vrot.slane %v1232, 2
        %v1239 = vrot.slane %v1234, 2
        %v1242 = vadd.f32 %v481, %v1238
        %v1243 = vadd.f32 %v483, %v1239
        %v1244 = vxor.u32 %v1242, 2147483648
        %v1245 = vxor.u32 %v1243, 2147483648
        %v1246 = vmul.f32 %v1244, 1.442695
        %v1247 = vpow.pop %v1246
        %v1248 = vmul.f32 %v1245, 1.442695
        %v1249 = vpow.pop %v1248
        %v1250 = vadd.f32 %v1247, 1.0
        %v1251 = vadd.f32 %v1249, 1.0
        %v1252 = vrcp.pop %v1250
        %v1253 = vmul.f32 1.0, %v1252
        %v1254 = vrcp.pop %v1251
        %v1255 = vmul.f32 1.0, %v1254
        %v1256 = vtanh.pop %v1243
        %v1258 = vrot.slane %v1044, 6
        %v1260 = vmul.f32 %v1253, %v1258
        %1262 = vrot.lane.b32.xlu0 %v1256, 64
        %v1263 = vpop.permute.xlu0 %1262
        %v1265 = vmul.f32 %v1253, %v1263
        %1267 = vrot.lane.b32.xlu0 %v1265, 64
        %v1268 = vpop.permute.xlu0 %1267
        %v1270 = vadd.f32 %v1260, %v1268
        %v1271 = vtanh.pop %v1270
        %1273 = vrot.lane.b32.xlu0 %v1271, 64
        %v1274 = vpop.permute.xlu0 %1273
        %v1276 = vmul.f32 %v1255, %v1274
        %v1278 = vrot.slane %v1160, 2
        %1279 = vrot.lane.b32.xlu0 %v1278, 64
        %v1280 = vpop.permute.xlu0 %1279
        %v1282 = vsel %vm489, %v1276, %v1280
        %v1284 = vrot.slane %v1282, 6
        %1286 = vmatprep.subr.mxu0 %v376
        %1287 = vmatpush1.msra.mxu0 %v375
        %1288 = vmatprep.subr.mxu0 %v374
        %1289 = vmatpush1.msra.mxu0 %v373
        %1290 = vmatprep.subr.mxu0 %v372
        %1291 = vmatpush1.msra.mxu0 %v371
        %1292 = vmatprep.subr.mxu0 %v370
        %1293 = vmatpush1.msra.mxu0 %v369
        %1294 = vmatprep.subr.mxu0 %v368
        %1295 = vmatpush1.msra.mxu0 %v367
        %1296 = vmatprep.subr.mxu0 %v366
        %1297 = vmatpush1.msra.mxu0 %v365
        %1298 = vmatprep.subr.mxu0 %v364
        %1299 = vmatpush1.msra.mxu0 %v363
        %1300 = vmatprep.subr.mxu0 %v362
        %1301 = vmatpush1.msra.mxu0 %v361
        %1302 = vmatprep.subr.mxu0 %v360
        %1303 = vmatpush1.msra.mxu0 %v359
        %1304 = vmatprep.subr.mxu0 %v358
        %1305 = vmatpush1.msra.mxu0 %v357
        %1306 = vmatprep.subr.mxu0 %v356
        %1307 = vmatpush1.msra.mxu0 %v355
        %1308 = vmatprep.subr.mxu0 %v354
        %1309 = vmatpush1.msra.mxu0 %v353
        %1310 = vmatprep.subr.mxu0 %v352
        %1311 = vmatpush1.msra.mxu0 %v351
        %1312 = vmatprep.subr.mxu0 %v350
        %1313 = vmatpush1.msra.mxu0 %v349
        %1314 = vmatprep.subr.mxu0 %v348
        %1315 = vmatpush1.msra.mxu0 %v347
        %1316 = vmatprep.subr.mxu0 %v346
        %1317 = vmatpush1.msra.mxu0 %v345
        %1318 = vmatprep.subr.mxu0 0.0
        %1319 = vmatpush2.msra.mxu0 0.0
        %1320 = vmatprep.subr.mxu0 0.0
        %1321 = vmatpush2.msra.mxu0 0.0
        %1322 = vmatprep.subr.mxu0 0.0
        %1323 = vmatpush2.msra.mxu0 0.0
        %1324 = vmatprep.subr.mxu0 0.0
        %1325 = vmatpush2.msra.mxu0 0.0
        %1326 = vmatprep.subr.mxu0 0.0
        %1327 = vmatpush2.msra.mxu0 0.0
        %1328 = vmatprep.subr.mxu0 0.0
        %1329 = vmatpush2.msra.mxu0 0.0
        %1330 = vmatprep.subr.mxu0 0.0
        %1331 = vmatpush2.msra.mxu0 0.0
        %1332 = vmatprep.subr.mxu0 0.0
        %1333 = vmatpush2.msra.mxu0 0.0
        %1334 = vmatprep.subr.mxu0 0.0
        %1335 = vmatpush2.msra.mxu0 0.0
        %1336 = vmatprep.subr.mxu0 0.0
        %1337 = vmatpush2.msra.mxu0 0.0
        %1338 = vmatprep.subr.mxu0 0.0
        %1339 = vmatpush2.msra.mxu0 0.0
        %1340 = vmatprep.subr.mxu0 0.0
        %1341 = vmatpush2.msra.mxu0 0.0
        %1342 = vmatprep.subr.mxu0 0.0
        %1343 = vmatpush2.msra.mxu0 0.0
        %1344 = vmatprep.subr.mxu0 0.0
        %1345 = vmatpush2.msra.mxu0 0.0
        %1346 = vmatprep.subr.mxu0 0.0
        %1347 = vmatpush2.msra.mxu0 0.0
        %1348 = vmatprep.subr.mxu0 0.0
        %1349 = vmatpush2.msra.mxu0 0.0
        %1350 = vmatprep.mubr.f32.mxu0 0.0
        %1351 = vmatmul.mubr.f32.gmra.mxu0 %v1284
        %v1352 = vpop.f32.mrf.mxu0
        %v1353 = vadd.f32 %v382, %v1352
        %v1354 = vpop.f32.mrf.mxu0
        %v1355 = vadd.f32 %v386, %v1354
        %1356 = vdwg.mxu0
        %v1357 = vxor.u32 %v1353, 2147483648
        %v1358 = vxor.u32 %v1355, 2147483648
        %v1359 = vmul.f32 %v1357, 1.442695
        %v1360 = vpow.pop %v1359
        %v1361 = vmul.f32 %v1358, 1.442695
        %v1362 = vpow.pop %v1361
        %v1363 = vadd.f32 %v1360, 1.0
        %v1364 = vadd.f32 %v1362, 1.0
        %v1365 = vrcp.pop %v1363
        %v1366 = vmul.f32 1.0, %v1365
        %v1367 = vrcp.pop %v1364
        %v1368 = vmul.f32 1.0, %v1367
        %v1369 = vtanh.pop %v1355
        %v1370 = vmul.f32 %v1366, %v1154
        %1372 = vrot.lane.b32.xlu0 %v1369, 64
        %v1373 = vpop.permute.xlu0 %1372
        %v1375 = vmul.f32 %v1366, %v1373
        %1377 = vrot.lane.b32.xlu0 %v1375, 64
        %v1378 = vpop.permute.xlu0 %1377
        %v1380 = vadd.f32 %v1370, %v1378
        %v1381 = vtanh.pop %v1380
        %1383 = vrot.lane.b32.xlu0 %v1381, 64
        %v1384 = vpop.permute.xlu0 %1383
        %v1386 = vmul.f32 %v1368, %v1384
        %vm1387 = vcmask 523270
        %1388 = vst.msk [vmem:[#allocation2 - $0x6] sm:$0xc0] %vm1387, %v1276
        %1390 = vrot.lane.b32.xlu0 %v1270, 64
        %v1391 = vpop.permute.xlu0 %1390
        %1393 = vst.msk [vmem:[#allocation3 - $0x6] sm:$0xc0] %vm1387, %v1391
        %vm1394 = vcmask 517120
        %1395 = vst.msk [vmem:[#allocation4] sm:$0x3] %vm1394, %v1386
        %1397 = vrot.lane.b32.xlu0 %v1380, 64
        %v1398 = vpop.permute.xlu0 %1397
        %1400 = vst.msk [vmem:[#allocation5] sm:$0x3] %vm1394, %v1398
        %p1401 = scmp.eq.s32.totalorder %s23, 1
        // Predicated region
        $region65: #{tpu_custom_call.1} parent=51 // pred_check
          %p1402 = pneg %p1401
        $region66: #{tpu_custom_call.1} parent=51 // pred_check_branch
          %1404 = sbr.rel (%p1402) target = $region68
        $region67: #{tpu_custom_call.1} parent=51 // pred_region
          %v1405 = vld [vmem:[%s6] sm:$0xff]
          %v1406 = vld [vmem:[%s6 + $0x8] sm:$0xff]
          %v1407 = vld [vmem:[%s6 + $0x10] sm:$0xff]
          %v1408 = vld [vmem:[%s6 + $0x18] sm:$0xff]
          %v1409 = vld [vmem:[%s6 + $0x20] sm:$0xff]
          %v1410 = vld [vmem:[%s6 + $0x28] sm:$0xff]
          %v1411 = vld [vmem:[%s6 + $0x30] sm:$0xff]
          %v1412 = vld [vmem:[%s6 + $0x38] sm:$0xff]
          %v1413 = vld [vmem:[#allocation6] sm:$0x1]
          %v1415 = vlaneseq
          %v1416 = vshrl.u32 %v1415, 7
          %v1417 = vsub.s32 0, %v1416
          %v1418 = vrot.slane %v1413, %v1417
          %v1421 = vsel %vm489, %v1386, 0
          %1423 = vmatprep.subr.mxu0 0.0
          %1424 = vmatpush1.msra.mxu0 0.0
          %1425 = vmatprep.subr.mxu0 0.0
          %1426 = vmatpush1.msra.mxu0 0.0
          %1427 = vmatprep.subr.mxu0 0.0
          %1428 = vmatpush1.msra.mxu0 0.0
          %1429 = vmatprep.subr.mxu0 0.0
          %1430 = vmatpush1.msra.mxu0 0.0
          %1431 = vmatprep.subr.mxu0 0.0
          %1432 = vmatpush1.msra.mxu0 0.0
          %1433 = vmatprep.subr.mxu0 0.0
          %1434 = vmatpush1.msra.mxu0 0.0
          %1435 = vmatprep.subr.mxu0 0.0
          %1436 = vmatpush1.msra.mxu0 0.0
          %1437 = vmatprep.subr.mxu0 0.0
          %1438 = vmatpush1.msra.mxu0 0.0
          %1439 = vmatprep.subr.mxu0 0.0
          %1440 = vmatpush1.msra.mxu0 %v1412
          %1441 = vmatprep.subr.mxu0 0.0
          %1442 = vmatpush1.msra.mxu0 %v1411
          %1443 = vmatprep.subr.mxu0 0.0
          %1444 = vmatpush1.msra.mxu0 %v1410
          %1445 = vmatprep.subr.mxu0 0.0
          %1446 = vmatpush1.msra.mxu0 %v1409
          %1447 = vmatprep.subr.mxu0 0.0
          %1448 = vmatpush1.msra.mxu0 %v1408
          %1449 = vmatprep.subr.mxu0 0.0
          %1450 = vmatpush1.msra.mxu0 %v1407
          %1451 = vmatprep.subr.mxu0 0.0
          %1452 = vmatpush1.msra.mxu0 %v1406
          %1453 = vmatprep.subr.mxu0 0.0
          %1454 = vmatpush1.msra.mxu0 %v1405
          %1455 = vmatprep.subr.mxu0 0.0
          %1456 = vmatpush2.msra.mxu0 0.0
          %1457 = vmatprep.subr.mxu0 0.0
          %1458 = vmatpush2.msra.mxu0 0.0
          %1459 = vmatprep.subr.mxu0 0.0
          %1460 = vmatpush2.msra.mxu0 0.0
          %1461 = vmatprep.subr.mxu0 0.0
          %1462 = vmatpush2.msra.mxu0 0.0
          %1463 = vmatprep.subr.mxu0 0.0
          %1464 = vmatpush2.msra.mxu0 0.0
          %1465 = vmatprep.subr.mxu0 0.0
          %1466 = vmatpush2.msra.mxu0 0.0
          %1467 = vmatprep.subr.mxu0 0.0
          %1468 = vmatpush2.msra.mxu0 0.0
          %1469 = vmatprep.subr.mxu0 0.0
          %1470 = vmatpush2.msra.mxu0 0.0
          %1471 = vmatprep.subr.mxu0 0.0
          %1472 = vmatpush2.msra.mxu0 0.0
          %1473 = vmatprep.subr.mxu0 0.0
          %1474 = vmatpush2.msra.mxu0 0.0
          %1475 = vmatprep.subr.mxu0 0.0
          %1476 = vmatpush2.msra.mxu0 0.0
          %1477 = vmatprep.subr.mxu0 0.0
          %1478 = vmatpush2.msra.mxu0 0.0
          %1479 = vmatprep.subr.mxu0 0.0
          %1480 = vmatpush2.msra.mxu0 0.0
          %1481 = vmatprep.subr.mxu0 0.0
          %1482 = vmatpush2.msra.mxu0 0.0
          %1483 = vmatprep.subr.mxu0 0.0
          %1484 = vmatpush2.msra.mxu0 0.0
          %1485 = vmatprep.subr.mxu0 0.0
          %1486 = vmatpush2.msra.mxu0 0.0
          %1487 = vmatprep.mubr.f32.mxu0 0.0
          %1488 = vmatmul.mubr.f32.gmra.mxu0 %v1421
          %v1489 = vpop.f32.mrf.mxu0
          %v1490 = vadd.f32 %v1418, %v1489
          %v1491 = vpop.f32.mrf.mxu0
          %1492 = vdwg.mxu0
          %vm1493 = vcmask 1024
          %1494 = vst.msk [vmem:[%s8] sm:$0x3] %vm1493, %v1490
        $region68: #{tpu_custom_call.1} parent=51 // pred_fallthru
          _
        // Predicated region
        $region69: #{tpu_custom_call.1} parent=51 // pred_check
          %p1495 = pneg %p209
        $region70: #{tpu_custom_call.1} parent=51 // pred_check_branch
          %1497 = sbr.rel (%p1495) target = $region72
        $region71: #{tpu_custom_call.1} parent=51 // pred_region
          _
        $region72: #{tpu_custom_call.1} parent=51 // pred_fallthru
          _
        // Predicated region
        $region73: #{tpu_custom_call.1} parent=51 // pred_check
          %p1498 = pneg %p209
        $region74: #{tpu_custom_call.1} parent=51 // pred_check_branch
          %1500 = sbr.rel (%p1498) target = $region76
        $region75: #{tpu_custom_call.1} parent=51 // pred_region
          _
        $region76: #{tpu_custom_call.1} parent=51 // pred_fallthru
          _
      $region52: #{tpu_custom_call.1} parent=5 // pred_fallthru
        _
      %p1501 = scmp.le.s32.totalorder 2, %s18
      // Predicated region
      $region77: #{tpu_custom_call.1} parent=5 // pred_check
        %p1502 = pneg %p1501
      $region78: #{tpu_custom_call.1} parent=5 // pred_check_branch
        %1504 = sbr.rel (%p1502) target = $region80
      $region79: #{tpu_custom_call.1} parent=5 // pred_region
        %s1505 = ssub.s32 %s18, 2
      $region80: #{tpu_custom_call.1} parent=5 // pred_fallthru
        _
    $region6: #{tpu_custom_call.1} parent=1 // loop_footer
      %s22 = sadd.s32 1, %s18
    $region7: #{tpu_custom_call.1} parent=1 // loop_footer_branch
      %17 = sbr.rel target = $region3
    $region8: #{tpu_custom_call.1} parent=1 // loop_exit
      _
    %1506 = vsyncpa [#allocation8], 1
    %s1507 = scalar_lea.sflag [#allocation8], 1
    %1508 = vsyncpa %s1507, 1
    %1509 = vsyncpa [#allocation10], 1

</llo_original>
